<compile_context>
chip_gen: v7x
topology: tpu7x:2x2x1
jax: 0.10.0
libtpu: 0.0.40
codegen_flags: <defaults>
</compile_context>

<pallas_src>
import functools

import jax
import jax.numpy as jnp
from jax import lax
from jax.experimental import pallas as pl
from jax.experimental.pallas import tpu as pltpu

LN_EPS = 1e-5


def _proj_norm_kernel(x_ref, w_ref, b_ref, g_ref, beta_ref, o_ref, *,
                      tokens_per_block):
    """y = x @ W + b, then per-token LayerNorm over the last C lanes.

    x_ref:    (B, D_in)              input embeddings (caller dtype)
    w_ref:    (D_in, tokens*C)       projection weight block (caller dtype)
    b_ref:    (1, tokens*C)          projection bias block
    g_ref:    (1, C)                 LayerNorm gamma
    beta_ref: (1, C)                 LayerNorm beta
    o_ref:    (B, tokens*C)          output block (contiguous (B, T*C) layout)
    """
    C = g_ref.shape[-1]

    # Single MXU matmul over this block's full output width; f32 accumulation.
    y = jnp.dot(x_ref[...], w_ref[...], preferred_element_type=jnp.float32)
    y = y + b_ref[...].astype(jnp.float32)

    g = g_ref[...].astype(jnp.float32)
    beta = beta_ref[...].astype(jnp.float32)

    # Per-token LayerNorm on static, 128-aligned lane slices; each normalized
    # slice is stored straight into its lane window (no concat / relayout).
    for t in range(tokens_per_block):
        yt = y[:, t * C:(t + 1) * C]
        mean = jnp.mean(yt, axis=-1, keepdims=True)
        var = jnp.mean((yt - mean) ** 2, axis=-1, keepdims=True)
        out = (yt - mean) * lax.rsqrt(var + LN_EPS) * g + beta
        o_ref[:, t * C:(t + 1) * C] = out.astype(o_ref.dtype)


def _nbytes(shape, dtype):
    n = 1
    for s in shape:
        n *= int(s)
    return n * jnp.dtype(dtype).itemsize


def image_proj_model0(image_embeds, w, b, gamma, beta, *, num_tokens, cross_dim,
                      tile_tokens=None):
    """IP-adapter projection + per-token LayerNorm.

    image_embeds: (B, D_in); w: (D_in, T*C); b: (T*C,); gamma/beta: (C,).
    Returns (B, T, C), matching the PyTorch module's forward.

    Inputs are consumed in the caller's dtypes (no wrapper casts); the matmul
    accumulates in f32 and all LayerNorm math is f32.  Callers that already
    store W/x in bf16 get the halved HBM traffic for free.
    """
    B, D_in = image_embeds.shape
    T, C = num_tokens, cross_dim
    N = T * C
    assert w.shape == (D_in, N), w.shape
    out_dtype = image_embeds.dtype

    b2 = b.reshape(1, N)
    g2 = gamma.reshape(1, C)
    beta2 = beta.reshape(1, C)

    w_bytes = _nbytes(w.shape, w.dtype)
    if tile_tokens is None:
        # Keep the single full-W block only while W sits comfortably in VMEM;
        # production IP-adapter W (tens of MiB) takes the token-tiled path.
        tile_tokens = w_bytes > (4 << 20)
    if tile_tokens and (C % 128 != 0 or D_in % 8 != 0):
        # Token tiling needs lane/sublane-aligned column blocks.
        tile_tokens = False

    if tile_tokens:
        grid = (T,)
        kernel = functools.partial(_proj_norm_kernel, tokens_per_block=1)
        dim_semantics = ("parallel",)       # tokens independent -> megacore/2nd TC
        vmem_need = (
            _nbytes((B, D_in), image_embeds.dtype)       # x (resident)
            + 2 * _nbytes((D_in, C), w.dtype)             # W column, double-buffered
            + 2 * _nbytes((1, C), b.dtype)                # bias column
            + 2 * _nbytes((1, C), gamma.dtype)            # gamma + beta
            + 2 * _nbytes((B, C), out_dtype)              # output block
            + _nbytes((B, C), jnp.float32))               # f32 intermediate
    else:
        grid = (1,)
        kernel = functools.partial(_proj_norm_kernel, tokens_per_block=T)
        dim_semantics = ("arbitrary",)
        vmem_need = (
            _nbytes((B, D_in), image_embeds.dtype)
            + _nbytes((D_in, N), w.dtype)                 # full W, single-buffered
            + _nbytes((1, N), b.dtype)
            + 2 * _nbytes((1, C), gamma.dtype)
            + _nbytes((B, N), out_dtype)
            + _nbytes((B, N), jnp.float32))
    vmem_limit = int(min(max(2 * vmem_need + (1 << 20), 8 << 20), 64 << 20))

    flops = 2 * B * D_in * N
    bytes_accessed = (
        _nbytes(image_embeds.shape, image_embeds.dtype)
        + w_bytes
        + _nbytes(b2.shape, b2.dtype)
        + _nbytes(g2.shape, g2.dtype)
        + _nbytes(beta2.shape, beta2.dtype)
        + B * N * jnp.dtype(out_dtype).itemsize)
    cost = pl.CostEstimate(flops=flops, transcendentals=B * T,
                           bytes_accessed=bytes_accessed)

    def call(use_single_buffer):
        def spec(shape, index_map, resident=False):
            # Resident operands (constant index map) waste VMEM + DMA
            # descriptors if double-buffered; request a single buffer.
            if resident and use_single_buffer:
                return pl.BlockSpec(shape, index_map,
                                    pipeline_mode=pl.Buffered(1))
            return pl.BlockSpec(shape, index_map)

        if tile_tokens:
            in_specs = [
                spec((B, D_in), lambda t: (0, 0), resident=True),   # x
                spec((D_in, C), lambda t: (0, t)),                  # W column
                spec((1, C), lambda t: (0, t)),                     # bias column
                spec((1, C), lambda t: (0, 0), resident=True),      # gamma
                spec((1, C), lambda t: (0, 0), resident=True),      # beta
            ]
            out_specs = pl.BlockSpec((B, C), lambda t: (0, t))
        else:
            in_specs = [
                spec((B, D_in), lambda i: (0, 0), resident=True),   # x
                spec((D_in, N), lambda i: (0, 0), resident=True),   # full W
                spec((1, N), lambda i: (0, 0), resident=True),      # bias
                spec((1, C), lambda i: (0, 0), resident=True),      # gamma
                spec((1, C), lambda i: (0, 0), resident=True),      # beta
            ]
            out_specs = pl.BlockSpec((B, N), lambda i: (0, 0))

        return pl.pallas_call(
            kernel,
            out_shape=jax.ShapeDtypeStruct((B, N), out_dtype),
            grid_spec=pltpu.PrefetchScalarGridSpec(
                num_scalar_prefetch=0,
                grid=grid,
                in_specs=in_specs,
                out_specs=out_specs,
            ),
            compiler_params=pltpu.CompilerParams(
                dimension_semantics=dim_semantics,
                vmem_limit_bytes=vmem_limit),
            cost_estimate=cost,
        )(image_embeds, w, b2, g2, beta2)

    try:
        out = jax.block_until_ready(call(True))
    except Exception:
        # pipeline_mode=pl.Buffered(1) not supported by this JAX build; fall
        # back to default double-buffering (identical semantics).
        out = call(False)

    # (B, T*C) -> (B, T, C) is a free contiguous reshape (no transpose, no
    # extra dispatch / HBM round trip).
    return out.reshape(B, T, C)


def _reference(image_embeds, w, b, gamma, beta, *, num_tokens, cross_dim):
    B = image_embeds.shape[0]
    y = image_embeds @ w + b
    y = y.reshape(B, num_tokens, cross_dim)
    mean = jnp.mean(y, axis=-1, keepdims=True)
    var = jnp.mean((y - mean) ** 2, axis=-1, keepdims=True)
    y = (y - mean) * lax.rsqrt(var + LN_EPS)
    return y * gamma + beta


if __name__ == "__main__":
    # Small shapes consistent with the module's forward:
    #   clip_embeddings_dim=256, cross_attention_dim=128, clip_extra_context_tokens=4
    B, D_IN, T, C = 2, 256, 4, 128

    key = jax.random.PRNGKey(0)
    k_x, k_w, k_b = jax.random.split(key, 3)

    image_embeds = jax.random.normal(k_x, (B, D_IN), dtype=jnp.float32)
    # Synthetic deterministic parameters (PyTorch default LN: gamma=1, beta=0).
    w = jax.random.normal(k_w, (D_IN, T * C), dtype=jnp.float32) * 0.02
    b = jax.random.normal(k_b, (T * C,), dtype=jnp.float32) * 0.01
    gamma = jnp.ones((C,), dtype=jnp.float32)
    beta = jnp.zeros((C,), dtype=jnp.float32)

    ref = _reference(image_embeds, w, b, gamma, beta, num_tokens=T, cross_dim=C)

    # Default path at these shapes: single grid step, full-W block, resident
    # single-buffered operands, output needs only a free reshape.
    out = image_proj_model0(image_embeds, w, b, gamma, beta,
                            num_tokens=T, cross_dim=C)
    out = jax.block_until_ready(out)
    assert out.shape == (B, T, C), out.shape
    err = float(jnp.max(jnp.abs(out - ref)))
    assert err < 2e-2, err

    # Forced token-tiled path (the production-sized-W layout): same semantics.
    out_tiled = image_proj_model0(image_embeds, w, b, gamma, beta,
                                  num_tokens=T, cross_dim=C, tile_tokens=True)
    out_tiled = jax.block_until_ready(out_tiled)
    assert out_tiled.shape == (B, T, C), out_tiled.shape
    err_t = float(jnp.max(jnp.abs(out_tiled - ref)))
    assert err_t < 2e-2, err_t

    print("KERNEL_OK")
</pallas_src>

<mosaic_0001>
module attributes {stable_mosaic.version = 11 : i64} {
  func.func @_proj_norm_kernel(%arg0: i32, %arg1: memref<2x256xf32, #tpu.memory_space<vmem>>, %arg2: memref<256x512xf32, #tpu.memory_space<vmem>>, %arg3: memref<1x512xf32, #tpu.memory_space<vmem>>, %arg4: memref<1x128xf32, #tpu.memory_space<vmem>>, %arg5: memref<1x128xf32, #tpu.memory_space<vmem>>, %arg6: memref<2x512xf32, #tpu.memory_space<vmem>>) attributes {dimension_semantics = [#tpu.dimension_semantics<arbitrary>], iteration_bounds = array<i64: 1>, scalar_prefetch = 0 : i64, scratch_operands = 0 : i64, tpu.core_type = #tpu.core_type<tc>, window_params = [{pipeline_mode = #tpu.pipeline_mode<synchronous>, transform_indices = @transform_0, window_bounds = array<i64: 2, 256>}, {pipeline_mode = #tpu.pipeline_mode<synchronous>, transform_indices = @transform_1, window_bounds = array<i64: 256, 512>}, {pipeline_mode = #tpu.pipeline_mode<synchronous>, transform_indices = @transform_2, window_bounds = array<i64: 1, 512>}, {pipeline_mode = #tpu.pipeline_mode<synchronous>, transform_indices = @transform_3, window_bounds = array<i64: 1, 128>}, {pipeline_mode = #tpu.pipeline_mode<synchronous>, transform_indices = @transform_4, window_bounds = array<i64: 1, 128>}, {pipeline_mode = #tpu.pipeline_mode<synchronous>, transform_indices = @transform_5, window_bounds = array<i64: 2, 512>}]} {
    %c0 = arith.constant 0 : index
    %c0_0 = arith.constant 0 : index
    %0 = vector.load %arg1[%c0, %c0_0] : memref<2x256xf32, #tpu.memory_space<vmem>>, vector<2x256xf32>
    %c0_1 = arith.constant 0 : index
    %c0_2 = arith.constant 0 : index
    %1 = vector.load %arg2[%c0_1, %c0_2] : memref<256x512xf32, #tpu.memory_space<vmem>>, vector<256x512xf32>
    %cst = arith.constant dense<0.000000e+00> : vector<2x512xf32>
    %2 = tpu.matmul %0, %1, %cst {dimension_numbers = #tpu.dot_dimension_numbers<[1], [0], [0], [1], [0, 0, 1, 1], [], []>} : vector<2x256xf32>, vector<256x512xf32>, vector<2x512xf32> -> vector<2x512xf32>
    %c0_3 = arith.constant 0 : index
    %c0_4 = arith.constant 0 : index
    %3 = vector.load %arg3[%c0_3, %c0_4] : memref<1x512xf32, #tpu.memory_space<vmem>>, vector<1x512xf32>
    %4 = vector.broadcast %3 : vector<1x512xf32> to vector<2x512xf32>
    %5 = arith.addf %2, %4 : vector<2x512xf32>
    %c0_5 = arith.constant 0 : index
    %c0_6 = arith.constant 0 : index
    %6 = vector.load %arg4[%c0_5, %c0_6] : memref<1x128xf32, #tpu.memory_space<vmem>>, vector<1x128xf32>
    %c0_7 = arith.constant 0 : index
    %c0_8 = arith.constant 0 : index
    %7 = vector.load %arg5[%c0_7, %c0_8] : memref<1x128xf32, #tpu.memory_space<vmem>>, vector<1x128xf32>
    %8 = vector.extract_strided_slice %5 {offsets = [0, 0], sizes = [2, 128], strides = [1, 1]} : vector<2x512xf32> to vector<2x128xf32>
    %cst_9 = arith.constant dense<0.000000e+00> : vector<2xf32>
    %9 = vector.multi_reduction <add>, %8, %cst_9 [1] : vector<2x128xf32> to vector<2xf32>
    %10 = vector.shape_cast %9 : vector<2xf32> to vector<2x1xf32>
    %cst_10 = arith.constant 1.280000e+02 : f32
    %11 = vector.broadcast %cst_10 : f32 to vector<2x1xf32>
    %12 = arith.divf %10, %11 : vector<2x1xf32>
    %13 = vector.broadcast %12 : vector<2x1xf32> to vector<2x128xf32>
    %14 = arith.subf %8, %13 : vector<2x128xf32>
    %15 = arith.mulf %14, %14 : vector<2x128xf32>
    %cst_11 = arith.constant dense<0.000000e+00> : vector<2xf32>
    %16 = vector.multi_reduction <add>, %15, %cst_11 [1] : vector<2x128xf32> to vector<2xf32>
    %17 = vector.shape_cast %16 : vector<2xf32> to vector<2x1xf32>
    %cst_12 = arith.constant 1.280000e+02 : f32
    %18 = vector.broadcast %cst_12 : f32 to vector<2x1xf32>
    %19 = arith.divf %17, %18 : vector<2x1xf32>
    %20 = vector.broadcast %12 : vector<2x1xf32> to vector<2x128xf32>
    %21 = arith.subf %8, %20 : vector<2x128xf32>
    %cst_13 = arith.constant 9.99999974E-6 : f32
    %22 = vector.broadcast %cst_13 : f32 to vector<2x1xf32>
    %23 = arith.addf %19, %22 : vector<2x1xf32>
    %24 = math.rsqrt %23 : vector<2x1xf32>
    %25 = vector.broadcast %24 : vector<2x1xf32> to vector<2x128xf32>
    %26 = arith.mulf %21, %25 : vector<2x128xf32>
    %27 = vector.broadcast %6 : vector<1x128xf32> to vector<2x128xf32>
    %28 = arith.mulf %26, %27 : vector<2x128xf32>
    %29 = vector.broadcast %7 : vector<1x128xf32> to vector<2x128xf32>
    %30 = arith.addf %28, %29 : vector<2x128xf32>
    %c0_14 = arith.constant 0 : index
    %c0_15 = arith.constant 0 : index
    %31 = vector.load %arg6[%c0_14, %c0_15] : memref<2x512xf32, #tpu.memory_space<vmem>>, vector<2x128xf32>
    tpu.vector_store %arg6[%c0_14, %c0_15], %30 {strides = array<i32>} : memref<2x512xf32, #tpu.memory_space<vmem>>, vector<2x128xf32>,
    %32 = vector.extract_strided_slice %5 {offsets = [0, 128], sizes = [2, 128], strides = [1, 1]} : vector<2x512xf32> to vector<2x128xf32>
    %cst_16 = arith.constant dense<0.000000e+00> : vector<2xf32>
    %33 = vector.multi_reduction <add>, %32, %cst_16 [1] : vector<2x128xf32> to vector<2xf32>
    %34 = vector.shape_cast %33 : vector<2xf32> to vector<2x1xf32>
    %cst_17 = arith.constant 1.280000e+02 : f32
    %35 = vector.broadcast %cst_17 : f32 to vector<2x1xf32>
    %36 = arith.divf %34, %35 : vector<2x1xf32>
    %37 = vector.broadcast %36 : vector<2x1xf32> to vector<2x128xf32>
    %38 = arith.subf %32, %37 : vector<2x128xf32>
    %39 = arith.mulf %38, %38 : vector<2x128xf32>
    %cst_18 = arith.constant dense<0.000000e+00> : vector<2xf32>
    %40 = vector.multi_reduction <add>, %39, %cst_18 [1] : vector<2x128xf32> to vector<2xf32>
    %41 = vector.shape_cast %40 : vector<2xf32> to vector<2x1xf32>
    %cst_19 = arith.constant 1.280000e+02 : f32
    %42 = vector.broadcast %cst_19 : f32 to vector<2x1xf32>
    %43 = arith.divf %41, %42 : vector<2x1xf32>
    %44 = vector.broadcast %36 : vector<2x1xf32> to vector<2x128xf32>
    %45 = arith.subf %32, %44 : vector<2x128xf32>
    %cst_20 = arith.constant 9.99999974E-6 : f32
    %46 = vector.broadcast %cst_20 : f32 to vector<2x1xf32>
    %47 = arith.addf %43, %46 : vector<2x1xf32>
    %48 = math.rsqrt %47 : vector<2x1xf32>
    %49 = vector.broadcast %48 : vector<2x1xf32> to vector<2x128xf32>
    %50 = arith.mulf %45, %49 : vector<2x128xf32>
    %51 = vector.broadcast %6 : vector<1x128xf32> to vector<2x128xf32>
    %52 = arith.mulf %50, %51 : vector<2x128xf32>
    %53 = vector.broadcast %7 : vector<1x128xf32> to vector<2x128xf32>
    %54 = arith.addf %52, %53 : vector<2x128xf32>
    %c0_21 = arith.constant 0 : index
    %c128 = arith.constant 128 : index
    %55 = vector.load %arg6[%c0_21, %c128] : memref<2x512xf32, #tpu.memory_space<vmem>>, vector<2x128xf32>
    tpu.vector_store %arg6[%c0_21, %c128], %54 {strides = array<i32>} : memref<2x512xf32, #tpu.memory_space<vmem>>, vector<2x128xf32>,
    %56 = vector.extract_strided_slice %5 {offsets = [0, 256], sizes = [2, 128], strides = [1, 1]} : vector<2x512xf32> to vector<2x128xf32>
    %cst_22 = arith.constant dense<0.000000e+00> : vector<2xf32>
    %57 = vector.multi_reduction <add>, %56, %cst_22 [1] : vector<2x128xf32> to vector<2xf32>
    %58 = vector.shape_cast %57 : vector<2xf32> to vector<2x1xf32>
    %cst_23 = arith.constant 1.280000e+02 : f32
    %59 = vector.broadcast %cst_23 : f32 to vector<2x1xf32>
    %60 = arith.divf %58, %59 : vector<2x1xf32>
    %61 = vector.broadcast %60 : vector<2x1xf32> to vector<2x128xf32>
    %62 = arith.subf %56, %61 : vector<2x128xf32>
    %63 = arith.mulf %62, %62 : vector<2x128xf32>
    %cst_24 = arith.constant dense<0.000000e+00> : vector<2xf32>
    %64 = vector.multi_reduction <add>, %63, %cst_24 [1] : vector<2x128xf32> to vector<2xf32>
    %65 = vector.shape_cast %64 : vector<2xf32> to vector<2x1xf32>
    %cst_25 = arith.constant 1.280000e+02 : f32
    %66 = vector.broadcast %cst_25 : f32 to vector<2x1xf32>
    %67 = arith.divf %65, %66 : vector<2x1xf32>
    %68 = vector.broadcast %60 : vector<2x1xf32> to vector<2x128xf32>
    %69 = arith.subf %56, %68 : vector<2x128xf32>
    %cst_26 = arith.constant 9.99999974E-6 : f32
    %70 = vector.broadcast %cst_26 : f32 to vector<2x1xf32>
    %71 = arith.addf %67, %70 : vector<2x1xf32>
    %72 = math.rsqrt %71 : vector<2x1xf32>
    %73 = vector.broadcast %72 : vector<2x1xf32> to vector<2x128xf32>
    %74 = arith.mulf %69, %73 : vector<2x128xf32>
    %75 = vector.broadcast %6 : vector<1x128xf32> to vector<2x128xf32>
    %76 = arith.mulf %74, %75 : vector<2x128xf32>
    %77 = vector.broadcast %7 : vector<1x128xf32> to vector<2x128xf32>
    %78 = arith.addf %76, %77 : vector<2x128xf32>
    %c0_27 = arith.constant 0 : index
    %c256 = arith.constant 256 : index
    %79 = vector.load %arg6[%c0_27, %c256] : memref<2x512xf32, #tpu.memory_space<vmem>>, vector<2x128xf32>
    tpu.vector_store %arg6[%c0_27, %c256], %78 {strides = array<i32>} : memref<2x512xf32, #tpu.memory_space<vmem>>, vector<2x128xf32>,
    %80 = vector.extract_strided_slice %5 {offsets = [0, 384], sizes = [2, 128], strides = [1, 1]} : vector<2x512xf32> to vector<2x128xf32>
    %cst_28 = arith.constant dense<0.000000e+00> : vector<2xf32>
    %81 = vector.multi_reduction <add>, %80, %cst_28 [1] : vector<2x128xf32> to vector<2xf32>
    %82 = vector.shape_cast %81 : vector<2xf32> to vector<2x1xf32>
    %cst_29 = arith.constant 1.280000e+02 : f32
    %83 = vector.broadcast %cst_29 : f32 to vector<2x1xf32>
    %84 = arith.divf %82, %83 : vector<2x1xf32>
    %85 = vector.broadcast %84 : vector<2x1xf32> to vector<2x128xf32>
    %86 = arith.subf %80, %85 : vector<2x128xf32>
    %87 = arith.mulf %86, %86 : vector<2x128xf32>
    %cst_30 = arith.constant dense<0.000000e+00> : vector<2xf32>
    %88 = vector.multi_reduction <add>, %87, %cst_30 [1] : vector<2x128xf32> to vector<2xf32>
    %89 = vector.shape_cast %88 : vector<2xf32> to vector<2x1xf32>
    %cst_31 = arith.constant 1.280000e+02 : f32
    %90 = vector.broadcast %cst_31 : f32 to vector<2x1xf32>
    %91 = arith.divf %89, %90 : vector<2x1xf32>
    %92 = vector.broadcast %84 : vector<2x1xf32> to vector<2x128xf32>
    %93 = arith.subf %80, %92 : vector<2x128xf32>
    %cst_32 = arith.constant 9.99999974E-6 : f32
    %94 = vector.broadcast %cst_32 : f32 to vector<2x1xf32>
    %95 = arith.addf %91, %94 : vector<2x1xf32>
    %96 = math.rsqrt %95 : vector<2x1xf32>
    %97 = vector.broadcast %96 : vector<2x1xf32> to vector<2x128xf32>
    %98 = arith.mulf %93, %97 : vector<2x128xf32>
    %99 = vector.broadcast %6 : vector<1x128xf32> to vector<2x128xf32>
    %100 = arith.mulf %98, %99 : vector<2x128xf32>
    %101 = vector.broadcast %7 : vector<1x128xf32> to vector<2x128xf32>
    %102 = arith.addf %100, %101 : vector<2x128xf32>
    %c0_33 = arith.constant 0 : index
    %c384 = arith.constant 384 : index
    %103 = vector.load %arg6[%c0_33, %c384] : memref<2x512xf32, #tpu.memory_space<vmem>>, vector<2x128xf32>
    tpu.vector_store %arg6[%c0_33, %c384], %102 {strides = array<i32>} : memref<2x512xf32, #tpu.memory_space<vmem>>, vector<2x128xf32>,
    return
  }
  func.func @transform_0(%arg0: i32) -> (i32, i32) {
    %c0_i32 = arith.constant 0 : i32
    %c0_i32_0 = arith.constant 0 : i32
    %c0_i32_1 = arith.constant 0 : i32
    return %c0_i32, %c0_i32_0 : i32, i32
  }
  func.func @transform_1(%arg0: i32) -> (i32, i32) {
    %c0_i32 = arith.constant 0 : i32
    %c0_i32_0 = arith.constant 0 : i32
    %c0_i32_1 = arith.constant 0 : i32
    return %c0_i32, %c0_i32_0 : i32, i32
  }
  func.func @transform_2(%arg0: i32) -> (i32, i32) {
    %c0_i32 = arith.constant 0 : i32
    %c0_i32_0 = arith.constant 0 : i32
    %c0_i32_1 = arith.constant 0 : i32
    return %c0_i32, %c0_i32_0 : i32, i32
  }
  func.func @transform_3(%arg0: i32) -> (i32, i32) {
    %c0_i32 = arith.constant 0 : i32
    %c0_i32_0 = arith.constant 0 : i32
    %c0_i32_1 = arith.constant 0 : i32
    return %c0_i32, %c0_i32_0 : i32, i32
  }
  func.func @transform_4(%arg0: i32) -> (i32, i32) {
    %c0_i32 = arith.constant 0 : i32
    %c0_i32_0 = arith.constant 0 : i32
    %c0_i32_1 = arith.constant 0 : i32
    return %c0_i32, %c0_i32_0 : i32, i32
  }
  func.func @transform_5(%arg0: i32) -> (i32, i32) {
    %c0_i32 = arith.constant 0 : i32
    %c0_i32_0 = arith.constant 0 : i32
    %c0_i32_1 = arith.constant 0 : i32
    return %c0_i32, %c0_i32_0 : i32, i32
  }
}

module attributes {stable_mosaic.version = 11 : i64} {
  func.func @_proj_norm_kernel(%arg0: i32, %arg1: memref<2x256xf32, #tpu.memory_space<vmem>>, %arg2: memref<256x512xf32, #tpu.memory_space<vmem>>, %arg3: memref<1x512xf32, #tpu.memory_space<vmem>>, %arg4: memref<1x128xf32, #tpu.memory_space<vmem>>, %arg5: memref<1x128xf32, #tpu.memory_space<vmem>>, %arg6: memref<2x512xf32, #tpu.memory_space<vmem>>) attributes {dimension_semantics = [#tpu.dimension_semantics<arbitrary>], iteration_bounds = array<i64: 1>, scalar_prefetch = 0 : i64, scratch_operands = 0 : i64, tpu.core_type = #tpu.core_type<tc>, window_params = [{pipeline_mode = #tpu.pipeline_mode<synchronous>, transform_indices = @transform_0, window_bounds = array<i64: 2, 256>}, {pipeline_mode = #tpu.pipeline_mode<synchronous>, transform_indices = @transform_1, window_bounds = array<i64: 256, 512>}, {pipeline_mode = #tpu.pipeline_mode<synchronous>, transform_indices = @transform_2, window_bounds = array<i64: 1, 512>}, {pipeline_mode = #tpu.pipeline_mode<synchronous>, transform_indices = @transform_3, window_bounds = array<i64: 1, 128>}, {pipeline_mode = #tpu.pipeline_mode<synchronous>, transform_indices = @transform_4, window_bounds = array<i64: 1, 128>}, {pipeline_mode = #tpu.pipeline_mode<synchronous>, transform_indices = @transform_5, window_bounds = array<i64: 2, 512>}]} {
    %c0 = arith.constant 0 : index
    %c0_0 = arith.constant 0 : index
    %0 = vector.load %arg1[%c0, %c0_0] : memref<2x256xf32, #tpu.memory_space<vmem>>, vector<2x256xf32>
    %c0_1 = arith.constant 0 : index
    %c0_2 = arith.constant 0 : index
    %1 = vector.load %arg2[%c0_1, %c0_2] : memref<256x512xf32, #tpu.memory_space<vmem>>, vector<256x512xf32>
    %cst = arith.constant dense<0.000000e+00> : vector<2x512xf32>
    %2 = tpu.matmul %0, %1, %cst {dimension_numbers = #tpu.dot_dimension_numbers<[1], [0], [0], [1], [0, 0, 1, 1], [], []>} : vector<2x256xf32>, vector<256x512xf32>, vector<2x512xf32> -> vector<2x512xf32>
    %c0_3 = arith.constant 0 : index
    %c0_4 = arith.constant 0 : index
    %3 = vector.load %arg3[%c0_3, %c0_4] : memref<1x512xf32, #tpu.memory_space<vmem>>, vector<1x512xf32>
    %4 = vector.broadcast %3 : vector<1x512xf32> to vector<2x512xf32>
    %5 = arith.addf %2, %4 : vector<2x512xf32>
    %c0_5 = arith.constant 0 : index
    %c0_6 = arith.constant 0 : index
    %6 = vector.load %arg4[%c0_5, %c0_6] : memref<1x128xf32, #tpu.memory_space<vmem>>, vector<1x128xf32>
    %c0_7 = arith.constant 0 : index
    %c0_8 = arith.constant 0 : index
    %7 = vector.load %arg5[%c0_7, %c0_8] : memref<1x128xf32, #tpu.memory_space<vmem>>, vector<1x128xf32>
    %8 = vector.extract_strided_slice %5 {offsets = [0, 0], sizes = [2, 128], strides = [1, 1]} : vector<2x512xf32> to vector<2x128xf32>
    %cst_9 = arith.constant dense<0.000000e+00> : vector<2xf32>
    %9 = vector.multi_reduction <add>, %8, %cst_9 [1] : vector<2x128xf32> to vector<2xf32>
    %10 = vector.shape_cast %9 : vector<2xf32> to vector<2x1xf32>
    %cst_10 = arith.constant 1.280000e+02 : f32
    %11 = vector.broadcast %cst_10 : f32 to vector<2x1xf32>
    %12 = arith.divf %10, %11 : vector<2x1xf32>
    %13 = vector.broadcast %12 : vector<2x1xf32> to vector<2x128xf32>
    %14 = arith.subf %8, %13 : vector<2x128xf32>
    %15 = arith.mulf %14, %14 : vector<2x128xf32>
    %cst_11 = arith.constant dense<0.000000e+00> : vector<2xf32>
    %16 = vector.multi_reduction <add>, %15, %cst_11 [1] : vector<2x128xf32> to vector<2xf32>
    %17 = vector.shape_cast %16 : vector<2xf32> to vector<2x1xf32>
    %cst_12 = arith.constant 1.280000e+02 : f32
    %18 = vector.broadcast %cst_12 : f32 to vector<2x1xf32>
    %19 = arith.divf %17, %18 : vector<2x1xf32>
    %20 = vector.broadcast %12 : vector<2x1xf32> to vector<2x128xf32>
    %21 = arith.subf %8, %20 : vector<2x128xf32>
    %cst_13 = arith.constant 9.99999974E-6 : f32
    %22 = vector.broadcast %cst_13 : f32 to vector<2x1xf32>
    %23 = arith.addf %19, %22 : vector<2x1xf32>
    %24 = math.rsqrt %23 : vector<2x1xf32>
    %25 = vector.broadcast %24 : vector<2x1xf32> to vector<2x128xf32>
    %26 = arith.mulf %21, %25 : vector<2x128xf32>
    %27 = vector.broadcast %6 : vector<1x128xf32> to vector<2x128xf32>
    %28 = arith.mulf %26, %27 : vector<2x128xf32>
    %29 = vector.broadcast %7 : vector<1x128xf32> to vector<2x128xf32>
    %30 = arith.addf %28, %29 : vector<2x128xf32>
    %c0_14 = arith.constant 0 : index
    %c0_15 = arith.constant 0 : index
    %31 = vector.load %arg6[%c0_14, %c0_15] : memref<2x512xf32, #tpu.memory_space<vmem>>, vector<2x128xf32>
    tpu.vector_store %arg6[%c0_14, %c0_15], %30 {strides = array<i32>} : memref<2x512xf32, #tpu.memory_space<vmem>>, vector<2x128xf32>,
    %32 = vector.extract_strided_slice %5 {offsets = [0, 128], sizes = [2, 128], strides = [1, 1]} : vector<2x512xf32> to vector<2x128xf32>
    %cst_16 = arith.constant dense<0.000000e+00> : vector<2xf32>
    %33 = vector.multi_reduction <add>, %32, %cst_16 [1] : vector<2x128xf32> to vector<2xf32>
    %34 = vector.shape_cast %33 : vector<2xf32> to vector<2x1xf32>
    %cst_17 = arith.constant 1.280000e+02 : f32
    %35 = vector.broadcast %cst_17 : f32 to vector<2x1xf32>
    %36 = arith.divf %34, %35 : vector<2x1xf32>
    %37 = vector.broadcast %36 : vector<2x1xf32> to vector<2x128xf32>
    %38 = arith.subf %32, %37 : vector<2x128xf32>
    %39 = arith.mulf %38, %38 : vector<2x128xf32>
    %cst_18 = arith.constant dense<0.000000e+00> : vector<2xf32>
    %40 = vector.multi_reduction <add>, %39, %cst_18 [1] : vector<2x128xf32> to vector<2xf32>
    %41 = vector.shape_cast %40 : vector<2xf32> to vector<2x1xf32>
    %cst_19 = arith.constant 1.280000e+02 : f32
    %42 = vector.broadcast %cst_19 : f32 to vector<2x1xf32>
    %43 = arith.divf %41, %42 : vector<2x1xf32>
    %44 = vector.broadcast %36 : vector<2x1xf32> to vector<2x128xf32>
    %45 = arith.subf %32, %44 : vector<2x128xf32>
    %cst_20 = arith.constant 9.99999974E-6 : f32
    %46 = vector.broadcast %cst_20 : f32 to vector<2x1xf32>
    %47 = arith.addf %43, %46 : vector<2x1xf32>
    %48 = math.rsqrt %47 : vector<2x1xf32>
    %49 = vector.broadcast %48 : vector<2x1xf32> to vector<2x128xf32>
    %50 = arith.mulf %45, %49 : vector<2x128xf32>
    %51 = vector.broadcast %6 : vector<1x128xf32> to vector<2x128xf32>
    %52 = arith.mulf %50, %51 : vector<2x128xf32>
    %53 = vector.broadcast %7 : vector<1x128xf32> to vector<2x128xf32>
    %54 = arith.addf %52, %53 : vector<2x128xf32>
    %c0_21 = arith.constant 0 : index
    %c128 = arith.constant 128 : index
    %55 = vector.load %arg6[%c0_21, %c128] : memref<2x512xf32, #tpu.memory_space<vmem>>, vector<2x128xf32>
    tpu.vector_store %arg6[%c0_21, %c128], %54 {strides = array<i32>} : memref<2x512xf32, #tpu.memory_space<vmem>>, vector<2x128xf32>,
    %56 = vector.extract_strided_slice %5 {offsets = [0, 256], sizes = [2, 128], strides = [1, 1]} : vector<2x512xf32> to vector<2x128xf32>
    %cst_22 = arith.constant dense<0.000000e+00> : vector<2xf32>
    %57 = vector.multi_reduction <add>, %56, %cst_22 [1] : vector<2x128xf32> to vector<2xf32>
    %58 = vector.shape_cast %57 : vector<2xf32> to vector<2x1xf32>
    %cst_23 = arith.constant 1.280000e+02 : f32
    %59 = vector.broadcast %cst_23 : f32 to vector<2x1xf32>
    %60 = arith.divf %58, %59 : vector<2x1xf32>
    %61 = vector.broadcast %60 : vector<2x1xf32> to vector<2x128xf32>
    %62 = arith.subf %56, %61 : vector<2x128xf32>
    %63 = arith.mulf %62, %62 : vector<2x128xf32>
    %cst_24 = arith.constant dense<0.000000e+00> : vector<2xf32>
    %64 = vector.multi_reduction <add>, %63, %cst_24 [1] : vector<2x128xf32> to vector<2xf32>
    %65 = vector.shape_cast %64 : vector<2xf32> to vector<2x1xf32>
    %cst_25 = arith.constant 1.280000e+02 : f32
    %66 = vector.broadcast %cst_25 : f32 to vector<2x1xf32>
    %67 = arith.divf %65, %66 : vector<2x1xf32>
    %68 = vector.broadcast %60 : vector<2x1xf32> to vector<2x128xf32>
    %69 = arith.subf %56, %68 : vector<2x128xf32>
    %cst_26 = arith.constant 9.99999974E-6 : f32
    %70 = vector.broadcast %cst_26 : f32 to vector<2x1xf32>
    %71 = arith.addf %67, %70 : vector<2x1xf32>
    %72 = math.rsqrt %71 : vector<2x1xf32>
    %73 = vector.broadcast %72 : vector<2x1xf32> to vector<2x128xf32>
    %74 = arith.mulf %69, %73 : vector<2x128xf32>
    %75 = vector.broadcast %6 : vector<1x128xf32> to vector<2x128xf32>
    %76 = arith.mulf %74, %75 : vector<2x128xf32>
    %77 = vector.broadcast %7 : vector<1x128xf32> to vector<2x128xf32>
    %78 = arith.addf %76, %77 : vector<2x128xf32>
    %c0_27 = arith.constant 0 : index
    %c256 = arith.constant 256 : index
    %79 = vector.load %arg6[%c0_27, %c256] : memref<2x512xf32, #tpu.memory_space<vmem>>, vector<2x128xf32>
    tpu.vector_store %arg6[%c0_27, %c256], %78 {strides = array<i32>} : memref<2x512xf32, #tpu.memory_space<vmem>>, vector<2x128xf32>,
    %80 = vector.extract_strided_slice %5 {offsets = [0, 384], sizes = [2, 128], strides = [1, 1]} : vector<2x512xf32> to vector<2x128xf32>
    %cst_28 = arith.constant dense<0.000000e+00> : vector<2xf32>
    %81 = vector.multi_reduction <add>, %80, %cst_28 [1] : vector<2x128xf32> to vector<2xf32>
    %82 = vector.shape_cast %81 : vector<2xf32> to vector<2x1xf32>
    %cst_29 = arith.constant 1.280000e+02 : f32
    %83 = vector.broadcast %cst_29 : f32 to vector<2x1xf32>
    %84 = arith.divf %82, %83 : vector<2x1xf32>
    %85 = vector.broadcast %84 : vector<2x1xf32> to vector<2x128xf32>
    %86 = arith.subf %80, %85 : vector<2x128xf32>
    %87 = arith.mulf %86, %86 : vector<2x128xf32>
    %cst_30 = arith.constant dense<0.000000e+00> : vector<2xf32>
    %88 = vector.multi_reduction <add>, %87, %cst_30 [1] : vector<2x128xf32> to vector<2xf32>
    %89 = vector.shape_cast %88 : vector<2xf32> to vector<2x1xf32>
    %cst_31 = arith.constant 1.280000e+02 : f32
    %90 = vector.broadcast %cst_31 : f32 to vector<2x1xf32>
    %91 = arith.divf %89, %90 : vector<2x1xf32>
    %92 = vector.broadcast %84 : vector<2x1xf32> to vector<2x128xf32>
    %93 = arith.subf %80, %92 : vector<2x128xf32>
    %cst_32 = arith.constant 9.99999974E-6 : f32
    %94 = vector.broadcast %cst_32 : f32 to vector<2x1xf32>
    %95 = arith.addf %91, %94 : vector<2x1xf32>
    %96 = math.rsqrt %95 : vector<2x1xf32>
    %97 = vector.broadcast %96 : vector<2x1xf32> to vector<2x128xf32>
    %98 = arith.mulf %93, %97 : vector<2x128xf32>
    %99 = vector.broadcast %6 : vector<1x128xf32> to vector<2x128xf32>
    %100 = arith.mulf %98, %99 : vector<2x128xf32>
    %101 = vector.broadcast %7 : vector<1x128xf32> to vector<2x128xf32>
    %102 = arith.addf %100, %101 : vector<2x128xf32>
    %c0_33 = arith.constant 0 : index
    %c384 = arith.constant 384 : index
    %103 = vector.load %arg6[%c0_33, %c384] : memref<2x512xf32, #tpu.memory_space<vmem>>, vector<2x128xf32>
    tpu.vector_store %arg6[%c0_33, %c384], %102 {strides = array<i32>} : memref<2x512xf32, #tpu.memory_space<vmem>>, vector<2x128xf32>,
    return
  }
  func.func @transform_0(%arg0: i32) -> (i32, i32) {
    %c0_i32 = arith.constant 0 : i32
    %c0_i32_0 = arith.constant 0 : i32
    %c0_i32_1 = arith.constant 0 : i32
    return %c0_i32, %c0_i32_0 : i32, i32
  }
  func.func @transform_1(%arg0: i32) -> (i32, i32) {
    %c0_i32 = arith.constant 0 : i32
    %c0_i32_0 = arith.constant 0 : i32
    %c0_i32_1 = arith.constant 0 : i32
    return %c0_i32, %c0_i32_0 : i32, i32
  }
  func.func @transform_2(%arg0: i32) -> (i32, i32) {
    %c0_i32 = arith.constant 0 : i32
    %c0_i32_0 = arith.constant 0 : i32
    %c0_i32_1 = arith.constant 0 : i32
    return %c0_i32, %c0_i32_0 : i32, i32
  }
  func.func @transform_3(%arg0: i32) -> (i32, i32) {
    %c0_i32 = arith.constant 0 : i32
    %c0_i32_0 = arith.constant 0 : i32
    %c0_i32_1 = arith.constant 0 : i32
    return %c0_i32, %c0_i32_0 : i32, i32
  }
  func.func @transform_4(%arg0: i32) -> (i32, i32) {
    %c0_i32 = arith.constant 0 : i32
    %c0_i32_0 = arith.constant 0 : i32
    %c0_i32_1 = arith.constant 0 : i32
    return %c0_i32, %c0_i32_0 : i32, i32
  }
  func.func @transform_5(%arg0: i32) -> (i32, i32) {
    %c0_i32 = arith.constant 0 : i32
    %c0_i32_0 = arith.constant 0 : i32
    %c0_i32_1 = arith.constant 0 : i32
    return %c0_i32, %c0_i32_0 : i32, i32
  }
}

</mosaic_0001>

<llo_original>
// kernel: tpu_custom_call.1
$region0: #{tpu_custom_call.1}
  #allocation0 [shape = 'u32[]', space=smem, size = 0x4, offset = 0x4, fixed_abs, tag = 'smem constant byte address 0x4 - core index']
  #allocation1 [shape = 'u32[144,128]{1,0:T(1,128)}', space=vmem, size = 0x12000, scoped, tag = 'internal scratch']
  %s0 = inlined_call_operand.hbm [shape: f32[2,256], index: 0, kind: input, shape index: {}]
  %s1 = inlined_call_operand.hbm [shape: f32[256,512], index: 1, kind: input, shape index: {}]
  %s2 = inlined_call_operand.vmem [shape: f32[1,512], index: 2, kind: input, shape index: {}]
  %s3 = inlined_call_operand.vmem [shape: f32[1,128], index: 3, kind: input, shape index: {}]
  %s4 = inlined_call_operand.vmem [shape: f32[1,128], index: 4, kind: input, shape index: {}]
  %s5 = inlined_call_operand.hbm [shape: f32[2,512], index: 5, kind: output, shape index: {}]
  %s6 = sld [smem:[#allocation0]]
  $region38: #{tpu_custom_call.1} parent=0
    _
  %s8 = ssub.s32 1, %s6
  %s9 = scalar_select 0, %s8, %s6
  $region1: #{tpu_custom_call.1} parent=0
    #allocation2 [shape = 'u8[2048]{0}', space=vmem, size = 0x800, scoped, tag = 'input window, operand 0, single buffered']
    #allocation3 [shape = 's32[1]{0}', space=sflag, size = 0x4, scoped, tag = 'scoped memory for tpu_custom_call.1']
    #allocation4 [shape = 's32[1]{0}', space=sflag, size = 0x4, scoped, tag = 'scoped memory for tpu_custom_call.1']
    #allocation5 [shape = 'u8[524288]{0}', space=vmem, size = 0x80000, scoped, tag = 'input window, operand 1, single buffered']
    #allocation6 [shape = 's32[1]{0}', space=sflag, size = 0x4, scoped, tag = 'scoped memory for tpu_custom_call.1']
    #allocation7 [shape = 'u8[4096]{0}', space=vmem, size = 0x1000, scoped, tag = 'output window, operand 0, single buffered']
    %10 = vsyncpa [#allocation3], 0
    %11 = vsyncpa [#allocation6], 0
    %12 = vsyncpa [#allocation4], 0
    // Predicated region
    $region2: #{tpu_custom_call.1} parent=1 // pred_check
      _
    $region3: #{tpu_custom_call.1} parent=1 // pred_check_branch
      %14 = sbr.rel (0) target = $region5
    $region4: #{tpu_custom_call.1} parent=1 // pred_region
      %s16 = ssub.s32 64, 64
      %17 = vsyncadd [#allocation3], %s16
      %s19 = sshll.u32 [#allocation2], 4
      %s20 = int_to_ptr.vmem [resolvable:$true] %s19
      %22 = dma.hbm_to_vmem [thread:$0]  %s0, 64, %s20, [#allocation3]
    $region5: #{tpu_custom_call.1} parent=1 // pred_fallthru
      _
    // Predicated region
    $region6: #{tpu_custom_call.1} parent=1 // pred_check
      _
    $region7: #{tpu_custom_call.1} parent=1 // pred_check_branch
      %24 = sbr.rel (0) target = $region9
    $region8: #{tpu_custom_call.1} parent=1 // pred_region
      %s26 = ssub.s32 16384, 16384
      %27 = vsyncadd [#allocation6], %s26
      %s28 = sshll.u32 [#allocation5], 4
      %s29 = int_to_ptr.vmem [resolvable:$true] %s28
      %34 = dma.hbm_to_vmem [thread:$0]  %s1, 16384, %s29, [#allocation6], 512, 512, 32
    $region9: #{tpu_custom_call.1} parent=1 // pred_fallthru
      _
    // Predicated region
    $region10: #{tpu_custom_call.1} parent=1 // pred_check
      _
    $region11: #{tpu_custom_call.1} parent=1 // pred_check_branch
      %36 = sbr.rel (0) target = $region13
    $region12: #{tpu_custom_call.1} parent=1 // pred_region
      _
    $region13: #{tpu_custom_call.1} parent=1 // pred_fallthru
      _
    // Predicated region
    $region14: #{tpu_custom_call.1} parent=1 // pred_check
      _
    $region15: #{tpu_custom_call.1} parent=1 // pred_check_branch
      %38 = sbr.rel (0) target = $region17
    $region16: #{tpu_custom_call.1} parent=1 // pred_region
      _
    $region17: #{tpu_custom_call.1} parent=1 // pred_fallthru
      _
    // Predicated region
    $region18: #{tpu_custom_call.1} parent=1 // pred_check
      _
    $region19: #{tpu_custom_call.1} parent=1 // pred_check_branch
      %40 = sbr.rel (0) target = $region21
    $region20: #{tpu_custom_call.1} parent=1 // pred_region
      _
    $region21: #{tpu_custom_call.1} parent=1 // pred_fallthru
      _
    // Predicated region
    $region22: #{tpu_custom_call.1} parent=1 // pred_check
      _
    $region23: #{tpu_custom_call.1} parent=1 // pred_check_branch
      %42 = sbr.rel (0) target = $region25
    $region24: #{tpu_custom_call.1} parent=1 // pred_region
      %43 = dma.done [#allocation3], 64
    $region25: #{tpu_custom_call.1} parent=1 // pred_fallthru
      _
    // Predicated region
    $region26: #{tpu_custom_call.1} parent=1 // pred_check
      _
    $region27: #{tpu_custom_call.1} parent=1 // pred_check_branch
      %45 = sbr.rel (0) target = $region29
    $region28: #{tpu_custom_call.1} parent=1 // pred_region
      %46 = dma.done [#allocation6], 16384
    $region29: #{tpu_custom_call.1} parent=1 // pred_fallthru
      _
    %v47 = vld [vmem:[#allocation2] sm:$0xf]
    %v48 = vld [vmem:[#allocation5] sm:$0xff]
    %v49 = vld [vmem:[#allocation5 + $0x8] sm:$0xff]
    %v50 = vld [vmem:[#allocation5 + $0x10] sm:$0xff]
    %v51 = vld [vmem:[#allocation5 + $0x18] sm:$0xff]
    %v52 = vld [vmem:[#allocation5 + $0x20] sm:$0xff]
    %v53 = vld [vmem:[#allocation5 + $0x28] sm:$0xff]
    %v54 = vld [vmem:[#allocation5 + $0x30] sm:$0xff]
    %v55 = vld [vmem:[#allocation5 + $0x38] sm:$0xff]
    %v56 = vld [vmem:[#allocation5 + $0x40] sm:$0xff]
    %v57 = vld [vmem:[#allocation5 + $0x48] sm:$0xff]
    %v58 = vld [vmem:[#allocation5 + $0x50] sm:$0xff]
    %v59 = vld [vmem:[#allocation5 + $0x58] sm:$0xff]
    %v60 = vld [vmem:[#allocation5 + $0x60] sm:$0xff]
    %v61 = vld [vmem:[#allocation5 + $0x68] sm:$0xff]
    %v62 = vld [vmem:[#allocation5 + $0x70] sm:$0xff]
    %v63 = vld [vmem:[#allocation5 + $0x78] sm:$0xff]
    %v64 = vld [vmem:[#allocation5 + $0x80] sm:$0xff]
    %v65 = vld [vmem:[#allocation5 + $0x88] sm:$0xff]
    %v66 = vld [vmem:[#allocation5 + $0x90] sm:$0xff]
    %v67 = vld [vmem:[#allocation5 + $0x98] sm:$0xff]
    %v68 = vld [vmem:[#allocation5 + $0xa0] sm:$0xff]
    %v69 = vld [vmem:[#allocation5 + $0xa8] sm:$0xff]
    %v70 = vld [vmem:[#allocation5 + $0xb0] sm:$0xff]
    %v71 = vld [vmem:[#allocation5 + $0xb8] sm:$0xff]
    %v72 = vld [vmem:[#allocation5 + $0xc0] sm:$0xff]
    %v73 = vld [vmem:[#allocation5 + $0xc8] sm:$0xff]
    %v74 = vld [vmem:[#allocation5 + $0xd0] sm:$0xff]
    %v75 = vld [vmem:[#allocation5 + $0xd8] sm:$0xff]
    %v76 = vld [vmem:[#allocation5 + $0xe0] sm:$0xff]
    %v77 = vld [vmem:[#allocation5 + $0xe8] sm:$0xff]
    %v78 = vld [vmem:[#allocation5 + $0xf0] sm:$0xff]
    %v79 = vld [vmem:[#allocation5 + $0xf8] sm:$0xff]
    %v80 = vld [vmem:[#allocation5 + $0x100] sm:$0xff]
    %v81 = vld [vmem:[#allocation5 + $0x108] sm:$0xff]
    %v82 = vld [vmem:[#allocation5 + $0x110] sm:$0xff]
    %v83 = vld [vmem:[#allocation5 + $0x118] sm:$0xff]
    %v84 = vld [vmem:[#allocation5 + $0x120] sm:$0xff]
    %v85 = vld [vmem:[#allocation5 + $0x128] sm:$0xff]
    %v86 = vld [vmem:[#allocation5 + $0x130] sm:$0xff]
    %v87 = vld [vmem:[#allocation5 + $0x138] sm:$0xff]
    %v88 = vld [vmem:[#allocation5 + $0x140] sm:$0xff]
    %v89 = vld [vmem:[#allocation5 + $0x148] sm:$0xff]
    %v90 = vld [vmem:[#allocation5 + $0x150] sm:$0xff]
    %v91 = vld [vmem:[#allocation5 + $0x158] sm:$0xff]
    %v92 = vld [vmem:[#allocation5 + $0x160] sm:$0xff]
    %v93 = vld [vmem:[#allocation5 + $0x168] sm:$0xff]
    %v94 = vld [vmem:[#allocation5 + $0x170] sm:$0xff]
    %v95 = vld [vmem:[#allocation5 + $0x178] sm:$0xff]
    %v96 = vld [vmem:[#allocation5 + $0x180] sm:$0xff]
    %v97 = vld [vmem:[#allocation5 + $0x188] sm:$0xff]
    %v98 = vld [vmem:[#allocation5 + $0x190] sm:$0xff]
    %v99 = vld [vmem:[#allocation5 + $0x198] sm:$0xff]
    %v100 = vld [vmem:[#allocation5 + $0x1a0] sm:$0xff]
    %v101 = vld [vmem:[#allocation5 + $0x1a8] sm:$0xff]
    %v102 = vld [vmem:[#allocation5 + $0x1b0] sm:$0xff]
    %v103 = vld [vmem:[#allocation5 + $0x1b8] sm:$0xff]
    %v104 = vld [vmem:[#allocation5 + $0x1c0] sm:$0xff]
    %v105 = vld [vmem:[#allocation5 + $0x1c8] sm:$0xff]
    %v106 = vld [vmem:[#allocation5 + $0x1d0] sm:$0xff]
    %v107 = vld [vmem:[#allocation5 + $0x1d8] sm:$0xff]
    %v108 = vld [vmem:[#allocation5 + $0x1e0] sm:$0xff]
    %v109 = vld [vmem:[#allocation5 + $0x1e8] sm:$0xff]
    %v110 = vld [vmem:[#allocation5 + $0x1f0] sm:$0xff]
    %v111 = vld [vmem:[#allocation5 + $0x1f8] sm:$0xff]
    %v112 = vld [vmem:[#allocation5 + $0x200] sm:$0xff]
    %v113 = vld [vmem:[#allocation5 + $0x208] sm:$0xff]
    %v114 = vld [vmem:[#allocation5 + $0x210] sm:$0xff]
    %v115 = vld [vmem:[#allocation5 + $0x218] sm:$0xff]
    %v116 = vld [vmem:[#allocation5 + $0x220] sm:$0xff]
    %v117 = vld [vmem:[#allocation5 + $0x228] sm:$0xff]
    %v118 = vld [vmem:[#allocation5 + $0x230] sm:$0xff]
    %v119 = vld [vmem:[#allocation5 + $0x238] sm:$0xff]
    %v120 = vld [vmem:[#allocation5 + $0x240] sm:$0xff]
    %v121 = vld [vmem:[#allocation5 + $0x248] sm:$0xff]
    %v122 = vld [vmem:[#allocation5 + $0x250] sm:$0xff]
    %v123 = vld [vmem:[#allocation5 + $0x258] sm:$0xff]
    %v124 = vld [vmem:[#allocation5 + $0x260] sm:$0xff]
    %v125 = vld [vmem:[#allocation5 + $0x268] sm:$0xff]
    %v126 = vld [vmem:[#allocation5 + $0x270] sm:$0xff]
    %v127 = vld [vmem:[#allocation5 + $0x278] sm:$0xff]
    %v128 = vld [vmem:[#allocation5 + $0x280] sm:$0xff]
    %v129 = vld [vmem:[#allocation5 + $0x288] sm:$0xff]
    %v130 = vld [vmem:[#allocation5 + $0x290] sm:$0xff]
    %v131 = vld [vmem:[#allocation5 + $0x298] sm:$0xff]
    %v132 = vld [vmem:[#allocation5 + $0x2a0] sm:$0xff]
    %v133 = vld [vmem:[#allocation5 + $0x2a8] sm:$0xff]
    %v134 = vld [vmem:[#allocation5 + $0x2b0] sm:$0xff]
    %v135 = vld [vmem:[#allocation5 + $0x2b8] sm:$0xff]
    %v136 = vld [vmem:[#allocation5 + $0x2c0] sm:$0xff]
    %v137 = vld [vmem:[#allocation5 + $0x2c8] sm:$0xff]
    %v138 = vld [vmem:[#allocation5 + $0x2d0] sm:$0xff]
    %v139 = vld [vmem:[#allocation5 + $0x2d8] sm:$0xff]
    %v140 = vld [vmem:[#allocation5 + $0x2e0] sm:$0xff]
    %v141 = vld [vmem:[#allocation5 + $0x2e8] sm:$0xff]
    %v142 = vld [vmem:[#allocation5 + $0x2f0] sm:$0xff]
    %v143 = vld [vmem:[#allocation5 + $0x2f8] sm:$0xff]
    %v144 = vld [vmem:[#allocation5 + $0x300] sm:$0xff]
    %v145 = vld [vmem:[#allocation5 + $0x308] sm:$0xff]
    %v146 = vld [vmem:[#allocation5 + $0x310] sm:$0xff]
    %v147 = vld [vmem:[#allocation5 + $0x318] sm:$0xff]
    %v148 = vld [vmem:[#allocation5 + $0x320] sm:$0xff]
    %v149 = vld [vmem:[#allocation5 + $0x328] sm:$0xff]
    %v150 = vld [vmem:[#allocation5 + $0x330] sm:$0xff]
    %v151 = vld [vmem:[#allocation5 + $0x338] sm:$0xff]
    %v152 = vld [vmem:[#allocation5 + $0x340] sm:$0xff]
    %v153 = vld [vmem:[#allocation5 + $0x348] sm:$0xff]
    %v154 = vld [vmem:[#allocation5 + $0x350] sm:$0xff]
    %v155 = vld [vmem:[#allocation5 + $0x358] sm:$0xff]
    %v156 = vld [vmem:[#allocation5 + $0x360] sm:$0xff]
    %v157 = vld [vmem:[#allocation5 + $0x368] sm:$0xff]
    %v158 = vld [vmem:[#allocation5 + $0x370] sm:$0xff]
    %v159 = vld [vmem:[#allocation5 + $0x378] sm:$0xff]
    %v160 = vld [vmem:[#allocation5 + $0x380] sm:$0xff]
    %v161 = vld [vmem:[#allocation5 + $0x388] sm:$0xff]
    %v162 = vld [vmem:[#allocation5 + $0x390] sm:$0xff]
    %v163 = vld [vmem:[#allocation5 + $0x398] sm:$0xff]
    %v164 = vld [vmem:[#allocation5 + $0x3a0] sm:$0xff]
    %v165 = vld [vmem:[#allocation5 + $0x3a8] sm:$0xff]
    %v166 = vld [vmem:[#allocation5 + $0x3b0] sm:$0xff]
    %v167 = vld [vmem:[#allocation5 + $0x3b8] sm:$0xff]
    %v168 = vld [vmem:[#allocation5 + $0x3c0] sm:$0xff]
    %v169 = vld [vmem:[#allocation5 + $0x3c8] sm:$0xff]
    %v170 = vld [vmem:[#allocation5 + $0x3d0] sm:$0xff]
    %v171 = vld [vmem:[#allocation5 + $0x3d8] sm:$0xff]
    %v172 = vld [vmem:[#allocation5 + $0x3e0] sm:$0xff]
    %v173 = vld [vmem:[#allocation5 + $0x3e8] sm:$0xff]
    %v174 = vld [vmem:[#allocation5 + $0x3f0] sm:$0xff]
    %v175 = vld [vmem:[#allocation5 + $0x3f8] sm:$0xff]
    %v176 = vld [vmem:[%s2] sm:$0xf]
    %v178 = vlaneseq
    %v179 = vshrl.u32 %v178, 7
    %v180 = vsub.s32 0, %v179
    %v181 = vrot.slane %v176, %v180
    %v182 = vlaneseq
    %v183 = vshrl.u32 %v182, 7
    %v184 = vsub.s32 1, %v183
    %v185 = vrot.slane %v176, %v184
    %v186 = vlaneseq
    %v187 = vshrl.u32 %v186, 7
    %v188 = vsub.s32 2, %v187
    %v189 = vrot.slane %v176, %v188
    %v190 = vlaneseq
    %v191 = vshrl.u32 %v190, 7
    %v192 = vsub.s32 3, %v191
    %v193 = vrot.slane %v176, %v192
    %v200 = vunpack.c.l.s4 1983009808
    %v201 = vunpack.c.0.s8 %v200
    %v202 = vlaneseq
    %v203 = vshrl.u32 %v202, 7
    %v204 = vsub.s32 %v201, %v203
    %v205 = vrot.slane %v47, %v204
    %v206 = vcombine.high %v205, %v205
    %209 = vmatprep.subr.mxu0 %v49
    %210 = vmatpush1.msra.mxu0 %v48
    %211 = vmatprep.subr.mxu0 %v53
    %212 = vmatpush1.msra.mxu0 %v52
    %213 = vmatprep.subr.mxu0 %v57
    %214 = vmatpush1.msra.mxu0 %v56
    %215 = vmatprep.subr.mxu0 %v61
    %216 = vmatpush1.msra.mxu0 %v60
    %217 = vmatprep.subr.mxu0 %v65
    %218 = vmatpush1.msra.mxu0 %v64
    %219 = vmatprep.subr.mxu0 %v69
    %220 = vmatpush1.msra.mxu0 %v68
    %221 = vmatprep.subr.mxu0 %v73
    %222 = vmatpush1.msra.mxu0 %v72
    %223 = vmatprep.subr.mxu0 %v77
    %224 = vmatpush1.msra.mxu0 %v76
    %225 = vmatprep.subr.mxu0 %v81
    %226 = vmatpush1.msra.mxu0 %v80
    %227 = vmatprep.subr.mxu0 %v85
    %228 = vmatpush1.msra.mxu0 %v84
    %229 = vmatprep.subr.mxu0 %v89
    %230 = vmatpush1.msra.mxu0 %v88
    %231 = vmatprep.subr.mxu0 %v93
    %232 = vmatpush1.msra.mxu0 %v92
    %233 = vmatprep.subr.mxu0 %v97
    %234 = vmatpush1.msra.mxu0 %v96
    %235 = vmatprep.subr.mxu0 %v101
    %236 = vmatpush1.msra.mxu0 %v100
    %237 = vmatprep.subr.mxu0 %v105
    %238 = vmatpush1.msra.mxu0 %v104
    %239 = vmatprep.subr.mxu0 %v109
    %240 = vmatpush1.msra.mxu0 %v108
    %241 = vmatprep.subr.mxu0 %v113
    %242 = vmatpush1.msra.mxu0 %v112
    %243 = vmatprep.subr.mxu0 %v117
    %244 = vmatpush1.msra.mxu0 %v116
    %245 = vmatprep.subr.mxu0 %v121
    %246 = vmatpush1.msra.mxu0 %v120
    %247 = vmatprep.subr.mxu0 %v125
    %248 = vmatpush1.msra.mxu0 %v124
    %249 = vmatprep.subr.mxu0 %v129
    %250 = vmatpush1.msra.mxu0 %v128
    %251 = vmatprep.subr.mxu0 %v133
    %252 = vmatpush1.msra.mxu0 %v132
    %253 = vmatprep.subr.mxu0 %v137
    %254 = vmatpush1.msra.mxu0 %v136
    %255 = vmatprep.subr.mxu0 %v141
    %256 = vmatpush1.msra.mxu0 %v140
    %257 = vmatprep.subr.mxu0 %v145
    %258 = vmatpush1.msra.mxu0 %v144
    %259 = vmatprep.subr.mxu0 %v149
    %260 = vmatpush1.msra.mxu0 %v148
    %261 = vmatprep.subr.mxu0 %v153
    %262 = vmatpush1.msra.mxu0 %v152
    %263 = vmatprep.subr.mxu0 %v157
    %264 = vmatpush1.msra.mxu0 %v156
    %265 = vmatprep.subr.mxu0 %v161
    %266 = vmatpush1.msra.mxu0 %v160
    %267 = vmatprep.subr.mxu0 %v165
    %268 = vmatpush1.msra.mxu0 %v164
    %269 = vmatprep.subr.mxu0 %v169
    %270 = vmatpush1.msra.mxu0 %v168
    %271 = vmatprep.subr.mxu0 %v173
    %272 = vmatpush1.msra.mxu0 %v172
    %273 = vmatprep.mubr.f32.mxu0 %v206
    %274 = vmatmul.mubr.f32.gmra.mrb[0].mxu0 %v205
    %v275 = vpop.f32.mrb[0].mxu0
    %v276 = vadd.f32 %v181, %v275
    %v277 = vpop.f32.mrb[0].mxu0
    %v278 = vadd.f32 %v185, %v277
    %279 = vdwg.mxu0
    %280 = vmatprep.subr.mxu0 %v51
    %281 = vmatpush1.msra.mxu0 %v50
    %282 = vmatprep.subr.mxu0 %v55
    %283 = vmatpush1.msra.mxu0 %v54
    %284 = vmatprep.subr.mxu0 %v59
    %285 = vmatpush1.msra.mxu0 %v58
    %286 = vmatprep.subr.mxu0 %v63
    %287 = vmatpush1.msra.mxu0 %v62
    %288 = vmatprep.subr.mxu0 %v67
    %289 = vmatpush1.msra.mxu0 %v66
    %290 = vmatprep.subr.mxu0 %v71
    %291 = vmatpush1.msra.mxu0 %v70
    %292 = vmatprep.subr.mxu0 %v75
    %293 = vmatpush1.msra.mxu0 %v74
    %294 = vmatprep.subr.mxu0 %v79
    %295 = vmatpush1.msra.mxu0 %v78
    %296 = vmatprep.subr.mxu0 %v83
    %297 = vmatpush1.msra.mxu0 %v82
    %298 = vmatprep.subr.mxu0 %v87
    %299 = vmatpush1.msra.mxu0 %v86
    %300 = vmatprep.subr.mxu0 %v91
    %301 = vmatpush1.msra.mxu0 %v90
    %302 = vmatprep.subr.mxu0 %v95
    %303 = vmatpush1.msra.mxu0 %v94
    %304 = vmatprep.subr.mxu0 %v99
    %305 = vmatpush1.msra.mxu0 %v98
    %306 = vmatprep.subr.mxu0 %v103
    %307 = vmatpush1.msra.mxu0 %v102
    %308 = vmatprep.subr.mxu0 %v107
    %309 = vmatpush1.msra.mxu0 %v106
    %310 = vmatprep.subr.mxu0 %v111
    %311 = vmatpush1.msra.mxu0 %v110
    %312 = vmatprep.subr.mxu0 %v115
    %313 = vmatpush1.msra.mxu0 %v114
    %314 = vmatprep.subr.mxu0 %v119
    %315 = vmatpush1.msra.mxu0 %v118
    %316 = vmatprep.subr.mxu0 %v123
    %317 = vmatpush1.msra.mxu0 %v122
    %318 = vmatprep.subr.mxu0 %v127
    %319 = vmatpush1.msra.mxu0 %v126
    %320 = vmatprep.subr.mxu0 %v131
    %321 = vmatpush1.msra.mxu0 %v130
    %322 = vmatprep.subr.mxu0 %v135
    %323 = vmatpush1.msra.mxu0 %v134
    %324 = vmatprep.subr.mxu0 %v139
    %325 = vmatpush1.msra.mxu0 %v138
    %326 = vmatprep.subr.mxu0 %v143
    %327 = vmatpush1.msra.mxu0 %v142
    %328 = vmatprep.subr.mxu0 %v147
    %329 = vmatpush1.msra.mxu0 %v146
    %330 = vmatprep.subr.mxu0 %v151
    %331 = vmatpush1.msra.mxu0 %v150
    %332 = vmatprep.subr.mxu0 %v155
    %333 = vmatpush1.msra.mxu0 %v154
    %334 = vmatprep.subr.mxu0 %v159
    %335 = vmatpush1.msra.mxu0 %v158
    %336 = vmatprep.subr.mxu0 %v163
    %337 = vmatpush1.msra.mxu0 %v162
    %338 = vmatprep.subr.mxu0 %v167
    %339 = vmatpush1.msra.mxu0 %v166
    %340 = vmatprep.subr.mxu0 %v171
    %341 = vmatpush1.msra.mxu0 %v170
    %342 = vmatprep.subr.mxu0 %v175
    %343 = vmatpush1.msra.mxu0 %v174
    %344 = vmatprep.mubr.f32.mxu0 %v206
    %345 = vmatmul.mubr.f32.gmra.mrb[0].mxu0 %v205
    %v346 = vpop.f32.mrb[0].mxu0
    %v347 = vadd.f32 %v189, %v346
    %v348 = vpop.f32.mrb[0].mxu0
    %v349 = vadd.f32 %v193, %v348
    %350 = vdwg.mxu0
    %v351 = vld [vmem:[%s3] sm:$0x1]
    %v352 = vld [vmem:[%s4] sm:$0x1]
    %vm353 = vcmask 1041408
    %v354 = vsel %vm353, %v276, 0.0
    %355 = vadd.xlane.f32.xlu0 %v354
    %v356 = vpop.xlane.xlu0 %355
    %v357 = vrcp.pop 128.0
    %v358 = vmul.f32 %v356, %v357
    %v359 = vsub.f32 %v276, %v358
    %v360 = vmul.f32 %v359, %v359
    %v361 = vsel %vm353, %v360, 0.0
    %362 = vadd.xlane.f32.xlu0 %v361
    %v363 = vpop.xlane.xlu0 %362
    %v364 = vmul.f32 %v363, %v357
    %v365 = vadd.f32 %v364, 1e-05
    %v366 = vrsqrt.pop %v365
    %v367 = vmul.f32 %v359, %v366
    %v369 = vlaneseq
    %v370 = vshrl.u32 %v369, 7
    %v371 = vsub.s32 0, %v370
    %v372 = vrot.slane %v351, %v371
    %v374 = vmul.f32 %v367, %v372
    %v376 = vlaneseq
    %v377 = vshrl.u32 %v376, 7
    %v378 = vsub.s32 0, %v377
    %v379 = vrot.slane %v352, %v378
    %v381 = vadd.f32 %v374, %v379
    %382 = vst [vmem:[#allocation7] sm:$0x3] %v381
    %v383 = vsel %vm353, %v278, 0.0
    %384 = vadd.xlane.f32.xlu0 %v383
    %v385 = vpop.xlane.xlu0 %384
    %v386 = vmul.f32 %v385, %v357
    %v387 = vsub.f32 %v278, %v386
    %v388 = vmul.f32 %v387, %v387
    %v389 = vsel %vm353, %v388, 0.0
    %390 = vadd.xlane.f32.xlu0 %v389
    %v391 = vpop.xlane.xlu0 %390
    %v392 = vmul.f32 %v391, %v357
    %v393 = vadd.f32 %v392, 1e-05
    %v394 = vrsqrt.pop %v393
    %v395 = vmul.f32 %v387, %v394
    %v396 = vmul.f32 %v395, %v372
    %v397 = vadd.f32 %v396, %v379
    %398 = vst [vmem:[#allocation7 + $0x2] sm:$0x3] %v397
    %v399 = vsel %vm353, %v347, 0.0
    %400 = vadd.xlane.f32.xlu0 %v399
    %v401 = vpop.xlane.xlu0 %400
    %v402 = vmul.f32 %v401, %v357
    %v403 = vsub.f32 %v347, %v402
    %v404 = vmul.f32 %v403, %v403
    %v405 = vsel %vm353, %v404, 0.0
    %406 = vadd.xlane.f32.xlu0 %v405
    %v407 = vpop.xlane.xlu0 %406
    %v408 = vmul.f32 %v407, %v357
    %v409 = vadd.f32 %v408, 1e-05
    %v410 = vrsqrt.pop %v409
    %v411 = vmul.f32 %v403, %v410
    %v412 = vmul.f32 %v411, %v372
    %v413 = vadd.f32 %v412, %v379
    %414 = vst [vmem:[#allocation7 + $0x4] sm:$0x3] %v413
    %v415 = vsel %vm353, %v349, 0.0
    %416 = vadd.xlane.f32.xlu0 %v415
    %v417 = vpop.xlane.xlu0 %416
    %v418 = vmul.f32 %v417, %v357
    %v419 = vsub.f32 %v349, %v418
    %v420 = vmul.f32 %v419, %v419
    %v421 = vsel %vm353, %v420, 0.0
    %422 = vadd.xlane.f32.xlu0 %v421
    %v423 = vpop.xlane.xlu0 %422
    %v424 = vmul.f32 %v423, %v357
    %v425 = vadd.f32 %v424, 1e-05
    %v426 = vrsqrt.pop %v425
    %v427 = vmul.f32 %v419, %v426
    %v428 = vmul.f32 %v427, %v372
    %v429 = vadd.f32 %v428, %v379
    %430 = vst [vmem:[#allocation7 + $0x6] sm:$0x3] %v429
    // Predicated region
    $region30: #{tpu_custom_call.1} parent=1 // pred_check
      _
    $region31: #{tpu_custom_call.1} parent=1 // pred_check_branch
      %432 = sbr.rel (0) target = $region33
    $region32: #{tpu_custom_call.1} parent=1 // pred_region
      %s434 = ssub.s32 128, 128
      %435 = vsyncadd [#allocation4], %s434
      %s437 = sshll.u32 [#allocation7], 4
      %s438 = int_to_ptr.vmem [resolvable:$true] %s437
      %440 = dma.vmem_to_hbm [thread:$0]  %s438, 128, %s5, [#allocation4]
    $region33: #{tpu_custom_call.1} parent=1 // pred_fallthru
      _
    // Predicated region
    $region34: #{tpu_custom_call.1} parent=1 // pred_check
      _
    $region35: #{tpu_custom_call.1} parent=1 // pred_check_branch
      %442 = sbr.rel (0) target = $region37
    $region36: #{tpu_custom_call.1} parent=1 // pred_region
      %443 = dma.done [#allocation4], 128
    $region37: #{tpu_custom_call.1} parent=1 // pred_fallthru
      _
    %444 = vsyncpa [#allocation3], 1
    %445 = vsyncpa [#allocation6], 1
    %446 = vsyncpa [#allocation4], 1

// kernel: tpu_custom_call.1
$region0: #{tpu_custom_call.1}
  #allocation0 [shape = 'u32[]', space=smem, size = 0x4, offset = 0x4, fixed_abs, tag = 'smem constant byte address 0x4 - core index']
  #allocation1 [shape = 'u32[144,128]{1,0:T(1,128)}', space=vmem, size = 0x12000, scoped, tag = 'internal scratch']
  %s0 = inlined_call_operand.hbm [shape: f32[2,256], index: 0, kind: input, shape index: {}]
  %s1 = inlined_call_operand.hbm [shape: f32[256,512], index: 1, kind: input, shape index: {}]
  %s2 = inlined_call_operand.vmem [shape: f32[1,512], index: 2, kind: input, shape index: {}]
  %s3 = inlined_call_operand.vmem [shape: f32[1,128], index: 3, kind: input, shape index: {}]
  %s4 = inlined_call_operand.vmem [shape: f32[1,128], index: 4, kind: input, shape index: {}]
  %s5 = inlined_call_operand.hbm [shape: f32[2,512], index: 5, kind: output, shape index: {}]
  %s6 = sld [smem:[#allocation0]]
  $region38: #{tpu_custom_call.1} parent=0
    _
  %s8 = ssub.s32 1, %s6
  %s9 = scalar_select 0, %s8, %s6
  $region1: #{tpu_custom_call.1} parent=0
    #allocation2 [shape = 'u8[2048]{0}', space=vmem, size = 0x800, scoped, tag = 'input window, operand 0, single buffered']
    #allocation3 [shape = 's32[1]{0}', space=sflag, size = 0x4, scoped, tag = 'scoped memory for tpu_custom_call.1']
    #allocation4 [shape = 's32[1]{0}', space=sflag, size = 0x4, scoped, tag = 'scoped memory for tpu_custom_call.1']
    #allocation5 [shape = 'u8[524288]{0}', space=vmem, size = 0x80000, scoped, tag = 'input window, operand 1, single buffered']
    #allocation6 [shape = 's32[1]{0}', space=sflag, size = 0x4, scoped, tag = 'scoped memory for tpu_custom_call.1']
    #allocation7 [shape = 'u8[4096]{0}', space=vmem, size = 0x1000, scoped, tag = 'output window, operand 0, single buffered']
    %10 = vsyncpa [#allocation3], 0
    %11 = vsyncpa [#allocation6], 0
    %12 = vsyncpa [#allocation4], 0
    // Predicated region
    $region2: #{tpu_custom_call.1} parent=1 // pred_check
      _
    $region3: #{tpu_custom_call.1} parent=1 // pred_check_branch
      %14 = sbr.rel (0) target = $region5
    $region4: #{tpu_custom_call.1} parent=1 // pred_region
      %s16 = ssub.s32 64, 64
      %17 = vsyncadd [#allocation3], %s16
      %s19 = sshll.u32 [#allocation2], 4
      %s20 = int_to_ptr.vmem [resolvable:$true] %s19
      %22 = dma.hbm_to_vmem [thread:$0]  %s0, 64, %s20, [#allocation3]
    $region5: #{tpu_custom_call.1} parent=1 // pred_fallthru
      _
    // Predicated region
    $region6: #{tpu_custom_call.1} parent=1 // pred_check
      _
    $region7: #{tpu_custom_call.1} parent=1 // pred_check_branch
      %24 = sbr.rel (0) target = $region9
    $region8: #{tpu_custom_call.1} parent=1 // pred_region
      %s26 = ssub.s32 16384, 16384
      %27 = vsyncadd [#allocation6], %s26
      %s28 = sshll.u32 [#allocation5], 4
      %s29 = int_to_ptr.vmem [resolvable:$true] %s28
      %34 = dma.hbm_to_vmem [thread:$0]  %s1, 16384, %s29, [#allocation6], 512, 512, 32
    $region9: #{tpu_custom_call.1} parent=1 // pred_fallthru
      _
    // Predicated region
    $region10: #{tpu_custom_call.1} parent=1 // pred_check
      _
    $region11: #{tpu_custom_call.1} parent=1 // pred_check_branch
      %36 = sbr.rel (0) target = $region13
    $region12: #{tpu_custom_call.1} parent=1 // pred_region
      _
    $region13: #{tpu_custom_call.1} parent=1 // pred_fallthru
      _
    // Predicated region
    $region14: #{tpu_custom_call.1} parent=1 // pred_check
      _
    $region15: #{tpu_custom_call.1} parent=1 // pred_check_branch
      %38 = sbr.rel (0) target = $region17
    $region16: #{tpu_custom_call.1} parent=1 // pred_region
      _
    $region17: #{tpu_custom_call.1} parent=1 // pred_fallthru
      _
    // Predicated region
    $region18: #{tpu_custom_call.1} parent=1 // pred_check
      _
    $region19: #{tpu_custom_call.1} parent=1 // pred_check_branch
      %40 = sbr.rel (0) target = $region21
    $region20: #{tpu_custom_call.1} parent=1 // pred_region
      _
    $region21: #{tpu_custom_call.1} parent=1 // pred_fallthru
      _
    // Predicated region
    $region22: #{tpu_custom_call.1} parent=1 // pred_check
      _
    $region23: #{tpu_custom_call.1} parent=1 // pred_check_branch
      %42 = sbr.rel (0) target = $region25
    $region24: #{tpu_custom_call.1} parent=1 // pred_region
      %43 = dma.done [#allocation3], 64
    $region25: #{tpu_custom_call.1} parent=1 // pred_fallthru
      _
    // Predicated region
    $region26: #{tpu_custom_call.1} parent=1 // pred_check
      _
    $region27: #{tpu_custom_call.1} parent=1 // pred_check_branch
      %45 = sbr.rel (0) target = $region29
    $region28: #{tpu_custom_call.1} parent=1 // pred_region
      %46 = dma.done [#allocation6], 16384
    $region29: #{tpu_custom_call.1} parent=1 // pred_fallthru
      _
    %v47 = vld [vmem:[#allocation2] sm:$0xf]
    %v48 = vld [vmem:[#allocation5] sm:$0xff]
    %v49 = vld [vmem:[#allocation5 + $0x8] sm:$0xff]
    %v50 = vld [vmem:[#allocation5 + $0x10] sm:$0xff]
    %v51 = vld [vmem:[#allocation5 + $0x18] sm:$0xff]
    %v52 = vld [vmem:[#allocation5 + $0x20] sm:$0xff]
    %v53 = vld [vmem:[#allocation5 + $0x28] sm:$0xff]
    %v54 = vld [vmem:[#allocation5 + $0x30] sm:$0xff]
    %v55 = vld [vmem:[#allocation5 + $0x38] sm:$0xff]
    %v56 = vld [vmem:[#allocation5 + $0x40] sm:$0xff]
    %v57 = vld [vmem:[#allocation5 + $0x48] sm:$0xff]
    %v58 = vld [vmem:[#allocation5 + $0x50] sm:$0xff]
    %v59 = vld [vmem:[#allocation5 + $0x58] sm:$0xff]
    %v60 = vld [vmem:[#allocation5 + $0x60] sm:$0xff]
    %v61 = vld [vmem:[#allocation5 + $0x68] sm:$0xff]
    %v62 = vld [vmem:[#allocation5 + $0x70] sm:$0xff]
    %v63 = vld [vmem:[#allocation5 + $0x78] sm:$0xff]
    %v64 = vld [vmem:[#allocation5 + $0x80] sm:$0xff]
    %v65 = vld [vmem:[#allocation5 + $0x88] sm:$0xff]
    %v66 = vld [vmem:[#allocation5 + $0x90] sm:$0xff]
    %v67 = vld [vmem:[#allocation5 + $0x98] sm:$0xff]
    %v68 = vld [vmem:[#allocation5 + $0xa0] sm:$0xff]
    %v69 = vld [vmem:[#allocation5 + $0xa8] sm:$0xff]
    %v70 = vld [vmem:[#allocation5 + $0xb0] sm:$0xff]
    %v71 = vld [vmem:[#allocation5 + $0xb8] sm:$0xff]
    %v72 = vld [vmem:[#allocation5 + $0xc0] sm:$0xff]
    %v73 = vld [vmem:[#allocation5 + $0xc8] sm:$0xff]
    %v74 = vld [vmem:[#allocation5 + $0xd0] sm:$0xff]
    %v75 = vld [vmem:[#allocation5 + $0xd8] sm:$0xff]
    %v76 = vld [vmem:[#allocation5 + $0xe0] sm:$0xff]
    %v77 = vld [vmem:[#allocation5 + $0xe8] sm:$0xff]
    %v78 = vld [vmem:[#allocation5 + $0xf0] sm:$0xff]
    %v79 = vld [vmem:[#allocation5 + $0xf8] sm:$0xff]
    %v80 = vld [vmem:[#allocation5 + $0x100] sm:$0xff]
    %v81 = vld [vmem:[#allocation5 + $0x108] sm:$0xff]
    %v82 = vld [vmem:[#allocation5 + $0x110] sm:$0xff]
    %v83 = vld [vmem:[#allocation5 + $0x118] sm:$0xff]
    %v84 = vld [vmem:[#allocation5 + $0x120] sm:$0xff]
    %v85 = vld [vmem:[#allocation5 + $0x128] sm:$0xff]
    %v86 = vld [vmem:[#allocation5 + $0x130] sm:$0xff]
    %v87 = vld [vmem:[#allocation5 + $0x138] sm:$0xff]
    %v88 = vld [vmem:[#allocation5 + $0x140] sm:$0xff]
    %v89 = vld [vmem:[#allocation5 + $0x148] sm:$0xff]
    %v90 = vld [vmem:[#allocation5 + $0x150] sm:$0xff]
    %v91 = vld [vmem:[#allocation5 + $0x158] sm:$0xff]
    %v92 = vld [vmem:[#allocation5 + $0x160] sm:$0xff]
    %v93 = vld [vmem:[#allocation5 + $0x168] sm:$0xff]
    %v94 = vld [vmem:[#allocation5 + $0x170] sm:$0xff]
    %v95 = vld [vmem:[#allocation5 + $0x178] sm:$0xff]
    %v96 = vld [vmem:[#allocation5 + $0x180] sm:$0xff]
    %v97 = vld [vmem:[#allocation5 + $0x188] sm:$0xff]
    %v98 = vld [vmem:[#allocation5 + $0x190] sm:$0xff]
    %v99 = vld [vmem:[#allocation5 + $0x198] sm:$0xff]
    %v100 = vld [vmem:[#allocation5 + $0x1a0] sm:$0xff]
    %v101 = vld [vmem:[#allocation5 + $0x1a8] sm:$0xff]
    %v102 = vld [vmem:[#allocation5 + $0x1b0] sm:$0xff]
    %v103 = vld [vmem:[#allocation5 + $0x1b8] sm:$0xff]
    %v104 = vld [vmem:[#allocation5 + $0x1c0] sm:$0xff]
    %v105 = vld [vmem:[#allocation5 + $0x1c8] sm:$0xff]
    %v106 = vld [vmem:[#allocation5 + $0x1d0] sm:$0xff]
    %v107 = vld [vmem:[#allocation5 + $0x1d8] sm:$0xff]
    %v108 = vld [vmem:[#allocation5 + $0x1e0] sm:$0xff]
    %v109 = vld [vmem:[#allocation5 + $0x1e8] sm:$0xff]
    %v110 = vld [vmem:[#allocation5 + $0x1f0] sm:$0xff]
    %v111 = vld [vmem:[#allocation5 + $0x1f8] sm:$0xff]
    %v112 = vld [vmem:[#allocation5 + $0x200] sm:$0xff]
    %v113 = vld [vmem:[#allocation5 + $0x208] sm:$0xff]
    %v114 = vld [vmem:[#allocation5 + $0x210] sm:$0xff]
    %v115 = vld [vmem:[#allocation5 + $0x218] sm:$0xff]
    %v116 = vld [vmem:[#allocation5 + $0x220] sm:$0xff]
    %v117 = vld [vmem:[#allocation5 + $0x228] sm:$0xff]
    %v118 = vld [vmem:[#allocation5 + $0x230] sm:$0xff]
    %v119 = vld [vmem:[#allocation5 + $0x238] sm:$0xff]
    %v120 = vld [vmem:[#allocation5 + $0x240] sm:$0xff]
    %v121 = vld [vmem:[#allocation5 + $0x248] sm:$0xff]
    %v122 = vld [vmem:[#allocation5 + $0x250] sm:$0xff]
    %v123 = vld [vmem:[#allocation5 + $0x258] sm:$0xff]
    %v124 = vld [vmem:[#allocation5 + $0x260] sm:$0xff]
    %v125 = vld [vmem:[#allocation5 + $0x268] sm:$0xff]
    %v126 = vld [vmem:[#allocation5 + $0x270] sm:$0xff]
    %v127 = vld [vmem:[#allocation5 + $0x278] sm:$0xff]
    %v128 = vld [vmem:[#allocation5 + $0x280] sm:$0xff]
    %v129 = vld [vmem:[#allocation5 + $0x288] sm:$0xff]
    %v130 = vld [vmem:[#allocation5 + $0x290] sm:$0xff]
    %v131 = vld [vmem:[#allocation5 + $0x298] sm:$0xff]
    %v132 = vld [vmem:[#allocation5 + $0x2a0] sm:$0xff]
    %v133 = vld [vmem:[#allocation5 + $0x2a8] sm:$0xff]
    %v134 = vld [vmem:[#allocation5 + $0x2b0] sm:$0xff]
    %v135 = vld [vmem:[#allocation5 + $0x2b8] sm:$0xff]
    %v136 = vld [vmem:[#allocation5 + $0x2c0] sm:$0xff]
    %v137 = vld [vmem:[#allocation5 + $0x2c8] sm:$0xff]
    %v138 = vld [vmem:[#allocation5 + $0x2d0] sm:$0xff]
    %v139 = vld [vmem:[#allocation5 + $0x2d8] sm:$0xff]
    %v140 = vld [vmem:[#allocation5 + $0x2e0] sm:$0xff]
    %v141 = vld [vmem:[#allocation5 + $0x2e8] sm:$0xff]
    %v142 = vld [vmem:[#allocation5 + $0x2f0] sm:$0xff]
    %v143 = vld [vmem:[#allocation5 + $0x2f8] sm:$0xff]
    %v144 = vld [vmem:[#allocation5 + $0x300] sm:$0xff]
    %v145 = vld [vmem:[#allocation5 + $0x308] sm:$0xff]
    %v146 = vld [vmem:[#allocation5 + $0x310] sm:$0xff]
    %v147 = vld [vmem:[#allocation5 + $0x318] sm:$0xff]
    %v148 = vld [vmem:[#allocation5 + $0x320] sm:$0xff]
    %v149 = vld [vmem:[#allocation5 + $0x328] sm:$0xff]
    %v150 = vld [vmem:[#allocation5 + $0x330] sm:$0xff]
    %v151 = vld [vmem:[#allocation5 + $0x338] sm:$0xff]
    %v152 = vld [vmem:[#allocation5 + $0x340] sm:$0xff]
    %v153 = vld [vmem:[#allocation5 + $0x348] sm:$0xff]
    %v154 = vld [vmem:[#allocation5 + $0x350] sm:$0xff]
    %v155 = vld [vmem:[#allocation5 + $0x358] sm:$0xff]
    %v156 = vld [vmem:[#allocation5 + $0x360] sm:$0xff]
    %v157 = vld [vmem:[#allocation5 + $0x368] sm:$0xff]
    %v158 = vld [vmem:[#allocation5 + $0x370] sm:$0xff]
    %v159 = vld [vmem:[#allocation5 + $0x378] sm:$0xff]
    %v160 = vld [vmem:[#allocation5 + $0x380] sm:$0xff]
    %v161 = vld [vmem:[#allocation5 + $0x388] sm:$0xff]
    %v162 = vld [vmem:[#allocation5 + $0x390] sm:$0xff]
    %v163 = vld [vmem:[#allocation5 + $0x398] sm:$0xff]
    %v164 = vld [vmem:[#allocation5 + $0x3a0] sm:$0xff]
    %v165 = vld [vmem:[#allocation5 + $0x3a8] sm:$0xff]
    %v166 = vld [vmem:[#allocation5 + $0x3b0] sm:$0xff]
    %v167 = vld [vmem:[#allocation5 + $0x3b8] sm:$0xff]
    %v168 = vld [vmem:[#allocation5 + $0x3c0] sm:$0xff]
    %v169 = vld [vmem:[#allocation5 + $0x3c8] sm:$0xff]
    %v170 = vld [vmem:[#allocation5 + $0x3d0] sm:$0xff]
    %v171 = vld [vmem:[#allocation5 + $0x3d8] sm:$0xff]
    %v172 = vld [vmem:[#allocation5 + $0x3e0] sm:$0xff]
    %v173 = vld [vmem:[#allocation5 + $0x3e8] sm:$0xff]
    %v174 = vld [vmem:[#allocation5 + $0x3f0] sm:$0xff]
    %v175 = vld [vmem:[#allocation5 + $0x3f8] sm:$0xff]
    %v176 = vld [vmem:[%s2] sm:$0xf]
    %v178 = vlaneseq
    %v179 = vshrl.u32 %v178, 7
    %v180 = vsub.s32 0, %v179
    %v181 = vrot.slane %v176, %v180
    %v182 = vlaneseq
    %v183 = vshrl.u32 %v182, 7
    %v184 = vsub.s32 1, %v183
    %v185 = vrot.slane %v176, %v184
    %v186 = vlaneseq
    %v187 = vshrl.u32 %v186, 7
    %v188 = vsub.s32 2, %v187
    %v189 = vrot.slane %v176, %v188
    %v190 = vlaneseq
    %v191 = vshrl.u32 %v190, 7
    %v192 = vsub.s32 3, %v191
    %v193 = vrot.slane %v176, %v192
    %v200 = vunpack.c.l.s4 1983009808
    %v201 = vunpack.c.0.s8 %v200
    %v202 = vlaneseq
    %v203 = vshrl.u32 %v202, 7
    %v204 = vsub.s32 %v201, %v203
    %v205 = vrot.slane %v47, %v204
    %v206 = vcombine.high %v205, %v205
    %209 = vmatprep.subr.mxu0 %v49
    %210 = vmatpush1.msra.mxu0 %v48
    %211 = vmatprep.subr.mxu0 %v53
    %212 = vmatpush1.msra.mxu0 %v52
    %213 = vmatprep.subr.mxu0 %v57
    %214 = vmatpush1.msra.mxu0 %v56
    %215 = vmatprep.subr.mxu0 %v61
    %216 = vmatpush1.msra.mxu0 %v60
    %217 = vmatprep.subr.mxu0 %v65
    %218 = vmatpush1.msra.mxu0 %v64
    %219 = vmatprep.subr.mxu0 %v69
    %220 = vmatpush1.msra.mxu0 %v68
    %221 = vmatprep.subr.mxu0 %v73
    %222 = vmatpush1.msra.mxu0 %v72
    %223 = vmatprep.subr.mxu0 %v77
    %224 = vmatpush1.msra.mxu0 %v76
    %225 = vmatprep.subr.mxu0 %v81
    %226 = vmatpush1.msra.mxu0 %v80
    %227 = vmatprep.subr.mxu0 %v85
    %228 = vmatpush1.msra.mxu0 %v84
    %229 = vmatprep.subr.mxu0 %v89
    %230 = vmatpush1.msra.mxu0 %v88
    %231 = vmatprep.subr.mxu0 %v93
    %232 = vmatpush1.msra.mxu0 %v92
    %233 = vmatprep.subr.mxu0 %v97
    %234 = vmatpush1.msra.mxu0 %v96
    %235 = vmatprep.subr.mxu0 %v101
    %236 = vmatpush1.msra.mxu0 %v100
    %237 = vmatprep.subr.mxu0 %v105
    %238 = vmatpush1.msra.mxu0 %v104
    %239 = vmatprep.subr.mxu0 %v109
    %240 = vmatpush1.msra.mxu0 %v108
    %241 = vmatprep.subr.mxu0 %v113
    %242 = vmatpush1.msra.mxu0 %v112
    %243 = vmatprep.subr.mxu0 %v117
    %244 = vmatpush1.msra.mxu0 %v116
    %245 = vmatprep.subr.mxu0 %v121
    %246 = vmatpush1.msra.mxu0 %v120
    %247 = vmatprep.subr.mxu0 %v125
    %248 = vmatpush1.msra.mxu0 %v124
    %249 = vmatprep.subr.mxu0 %v129
    %250 = vmatpush1.msra.mxu0 %v128
    %251 = vmatprep.subr.mxu0 %v133
    %252 = vmatpush1.msra.mxu0 %v132
    %253 = vmatprep.subr.mxu0 %v137
    %254 = vmatpush1.msra.mxu0 %v136
    %255 = vmatprep.subr.mxu0 %v141
    %256 = vmatpush1.msra.mxu0 %v140
    %257 = vmatprep.subr.mxu0 %v145
    %258 = vmatpush1.msra.mxu0 %v144
    %259 = vmatprep.subr.mxu0 %v149
    %260 = vmatpush1.msra.mxu0 %v148
    %261 = vmatprep.subr.mxu0 %v153
    %262 = vmatpush1.msra.mxu0 %v152
    %263 = vmatprep.subr.mxu0 %v157
    %264 = vmatpush1.msra.mxu0 %v156
    %265 = vmatprep.subr.mxu0 %v161
    %266 = vmatpush1.msra.mxu0 %v160
    %267 = vmatprep.subr.mxu0 %v165
    %268 = vmatpush1.msra.mxu0 %v164
    %269 = vmatprep.subr.mxu0 %v169
    %270 = vmatpush1.msra.mxu0 %v168
    %271 = vmatprep.subr.mxu0 %v173
    %272 = vmatpush1.msra.mxu0 %v172
    %273 = vmatprep.mubr.f32.mxu0 %v206
    %274 = vmatmul.mubr.f32.gmra.mrb[0].mxu0 %v205
    %v275 = vpop.f32.mrb[0].mxu0
    %v276 = vadd.f32 %v181, %v275
    %v277 = vpop.f32.mrb[0].mxu0
    %v278 = vadd.f32 %v185, %v277
    %279 = vdwg.mxu0
    %280 = vmatprep.subr.mxu0 %v51
    %281 = vmatpush1.msra.mxu0 %v50
    %282 = vmatprep.subr.mxu0 %v55
    %283 = vmatpush1.msra.mxu0 %v54
    %284 = vmatprep.subr.mxu0 %v59
    %285 = vmatpush1.msra.mxu0 %v58
    %286 = vmatprep.subr.mxu0 %v63
    %287 = vmatpush1.msra.mxu0 %v62
    %288 = vmatprep.subr.mxu0 %v67
    %289 = vmatpush1.msra.mxu0 %v66
    %290 = vmatprep.subr.mxu0 %v71
    %291 = vmatpush1.msra.mxu0 %v70
    %292 = vmatprep.subr.mxu0 %v75
    %293 = vmatpush1.msra.mxu0 %v74
    %294 = vmatprep.subr.mxu0 %v79
    %295 = vmatpush1.msra.mxu0 %v78
    %296 = vmatprep.subr.mxu0 %v83
    %297 = vmatpush1.msra.mxu0 %v82
    %298 = vmatprep.subr.mxu0 %v87
    %299 = vmatpush1.msra.mxu0 %v86
    %300 = vmatprep.subr.mxu0 %v91
    %301 = vmatpush1.msra.mxu0 %v90
    %302 = vmatprep.subr.mxu0 %v95
    %303 = vmatpush1.msra.mxu0 %v94
    %304 = vmatprep.subr.mxu0 %v99
    %305 = vmatpush1.msra.mxu0 %v98
    %306 = vmatprep.subr.mxu0 %v103
    %307 = vmatpush1.msra.mxu0 %v102
    %308 = vmatprep.subr.mxu0 %v107
    %309 = vmatpush1.msra.mxu0 %v106
    %310 = vmatprep.subr.mxu0 %v111
    %311 = vmatpush1.msra.mxu0 %v110
    %312 = vmatprep.subr.mxu0 %v115
    %313 = vmatpush1.msra.mxu0 %v114
    %314 = vmatprep.subr.mxu0 %v119
    %315 = vmatpush1.msra.mxu0 %v118
    %316 = vmatprep.subr.mxu0 %v123
    %317 = vmatpush1.msra.mxu0 %v122
    %318 = vmatprep.subr.mxu0 %v127
    %319 = vmatpush1.msra.mxu0 %v126
    %320 = vmatprep.subr.mxu0 %v131
    %321 = vmatpush1.msra.mxu0 %v130
    %322 = vmatprep.subr.mxu0 %v135
    %323 = vmatpush1.msra.mxu0 %v134
    %324 = vmatprep.subr.mxu0 %v139
    %325 = vmatpush1.msra.mxu0 %v138
    %326 = vmatprep.subr.mxu0 %v143
    %327 = vmatpush1.msra.mxu0 %v142
    %328 = vmatprep.subr.mxu0 %v147
    %329 = vmatpush1.msra.mxu0 %v146
    %330 = vmatprep.subr.mxu0 %v151
    %331 = vmatpush1.msra.mxu0 %v150
    %332 = vmatprep.subr.mxu0 %v155
    %333 = vmatpush1.msra.mxu0 %v154
    %334 = vmatprep.subr.mxu0 %v159
    %335 = vmatpush1.msra.mxu0 %v158
    %336 = vmatprep.subr.mxu0 %v163
    %337 = vmatpush1.msra.mxu0 %v162
    %338 = vmatprep.subr.mxu0 %v167
    %339 = vmatpush1.msra.mxu0 %v166
    %340 = vmatprep.subr.mxu0 %v171
    %341 = vmatpush1.msra.mxu0 %v170
    %342 = vmatprep.subr.mxu0 %v175
    %343 = vmatpush1.msra.mxu0 %v174
    %344 = vmatprep.mubr.f32.mxu0 %v206
    %345 = vmatmul.mubr.f32.gmra.mrb[0].mxu0 %v205
    %v346 = vpop.f32.mrb[0].mxu0
    %v347 = vadd.f32 %v189, %v346
    %v348 = vpop.f32.mrb[0].mxu0
    %v349 = vadd.f32 %v193, %v348
    %350 = vdwg.mxu0
    %v351 = vld [vmem:[%s3] sm:$0x1]
    %v352 = vld [vmem:[%s4] sm:$0x1]
    %vm353 = vcmask 1041408
    %v354 = vsel %vm353, %v276, 0.0
    %355 = vadd.xlane.f32.xlu0 %v354
    %v356 = vpop.xlane.xlu0 %355
    %v357 = vrcp.pop 128.0
    %v358 = vmul.f32 %v356, %v357
    %v359 = vsub.f32 %v276, %v358
    %v360 = vmul.f32 %v359, %v359
    %v361 = vsel %vm353, %v360, 0.0
    %362 = vadd.xlane.f32.xlu0 %v361
    %v363 = vpop.xlane.xlu0 %362
    %v364 = vmul.f32 %v363, %v357
    %v365 = vadd.f32 %v364, 1e-05
    %v366 = vrsqrt.pop %v365
    %v367 = vmul.f32 %v359, %v366
    %v369 = vlaneseq
    %v370 = vshrl.u32 %v369, 7
    %v371 = vsub.s32 0, %v370
    %v372 = vrot.slane %v351, %v371
    %v374 = vmul.f32 %v367, %v372
    %v376 = vlaneseq
    %v377 = vshrl.u32 %v376, 7
    %v378 = vsub.s32 0, %v377
    %v379 = vrot.slane %v352, %v378
    %v381 = vadd.f32 %v374, %v379
    %382 = vst [vmem:[#allocation7] sm:$0x3] %v381
    %v383 = vsel %vm353, %v278, 0.0
    %384 = vadd.xlane.f32.xlu0 %v383
    %v385 = vpop.xlane.xlu0 %384
    %v386 = vmul.f32 %v385, %v357
    %v387 = vsub.f32 %v278, %v386
    %v388 = vmul.f32 %v387, %v387
    %v389 = vsel %vm353, %v388, 0.0
    %390 = vadd.xlane.f32.xlu0 %v389
    %v391 = vpop.xlane.xlu0 %390
    %v392 = vmul.f32 %v391, %v357
    %v393 = vadd.f32 %v392, 1e-05
    %v394 = vrsqrt.pop %v393
    %v395 = vmul.f32 %v387, %v394
    %v396 = vmul.f32 %v395, %v372
    %v397 = vadd.f32 %v396, %v379
    %398 = vst [vmem:[#allocation7 + $0x2] sm:$0x3] %v397
    %v399 = vsel %vm353, %v347, 0.0
    %400 = vadd.xlane.f32.xlu0 %v399
    %v401 = vpop.xlane.xlu0 %400
    %v402 = vmul.f32 %v401, %v357
    %v403 = vsub.f32 %v347, %v402
    %v404 = vmul.f32 %v403, %v403
    %v405 = vsel %vm353, %v404, 0.0
    %406 = vadd.xlane.f32.xlu0 %v405
    %v407 = vpop.xlane.xlu0 %406
    %v408 = vmul.f32 %v407, %v357
    %v409 = vadd.f32 %v408, 1e-05
    %v410 = vrsqrt.pop %v409
    %v411 = vmul.f32 %v403, %v410
    %v412 = vmul.f32 %v411, %v372
    %v413 = vadd.f32 %v412, %v379
    %414 = vst [vmem:[#allocation7 + $0x4] sm:$0x3] %v413
    %v415 = vsel %vm353, %v349, 0.0
    %416 = vadd.xlane.f32.xlu0 %v415
    %v417 = vpop.xlane.xlu0 %416
    %v418 = vmul.f32 %v417, %v357
    %v419 = vsub.f32 %v349, %v418
    %v420 = vmul.f32 %v419, %v419
    %v421 = vsel %vm353, %v420, 0.0
    %422 = vadd.xlane.f32.xlu0 %v421
    %v423 = vpop.xlane.xlu0 %422
    %v424 = vmul.f32 %v423, %v357
    %v425 = vadd.f32 %v424, 1e-05
    %v426 = vrsqrt.pop %v425
    %v427 = vmul.f32 %v419, %v426
    %v428 = vmul.f32 %v427, %v372
    %v429 = vadd.f32 %v428, %v379
    %430 = vst [vmem:[#allocation7 + $0x6] sm:$0x3] %v429
    // Predicated region
    $region30: #{tpu_custom_call.1} parent=1 // pred_check
      _
    $region31: #{tpu_custom_call.1} parent=1 // pred_check_branch
      %432 = sbr.rel (0) target = $region33
    $region32: #{tpu_custom_call.1} parent=1 // pred_region
      %s434 = ssub.s32 128, 128
      %435 = vsyncadd [#allocation4], %s434
      %s437 = sshll.u32 [#allocation7], 4
      %s438 = int_to_ptr.vmem [resolvable:$true] %s437
      %440 = dma.vmem_to_hbm [thread:$0]  %s438, 128, %s5, [#allocation4]
    $region33: #{tpu_custom_call.1} parent=1 // pred_fallthru
      _
    // Predicated region
    $region34: #{tpu_custom_call.1} parent=1 // pred_check
      _
    $region35: #{tpu_custom_call.1} parent=1 // pred_check_branch
      %442 = sbr.rel (0) target = $region37
    $region36: #{tpu_custom_call.1} parent=1 // pred_region
      %443 = dma.done [#allocation4], 128
    $region37: #{tpu_custom_call.1} parent=1 // pred_fallthru
      _
    %444 = vsyncpa [#allocation3], 1
    %445 = vsyncpa [#allocation6], 1
    %446 = vsyncpa [#allocation4], 1

</llo_original>
